<compile_context>
chip_gen: v5e
topology: v5e:2x2
jax: 0.10.0
libtpu: 0.0.40
codegen_flags: <defaults>
</compile_context>

<pallas_src>
from functools import partial

import jax
import jax.numpy as jnp
from jax.experimental import pallas as pl
from jax.experimental.pallas import tpu as pltpu


# -----------------------------------------------------------------------------
# Pallas kernel: full forward pass, whole problem resident in VMEM.
# -----------------------------------------------------------------------------
def _eha_kernel(x_ref,      # (B*C, H*W)  f32   input, NCHW flattened
                mask_ref,   # (4, H*W)    f32   [j>=1, j<=W-2, i>=1, i<=H-2]
                dwc_ref,    # (B*C, 9)    f32   depthwise taps per row (k=ky*3+kx)
                pwbd_ref,   # (B*C, B*C)  bf16  kron(I_B, pointwise_conv.weight)
                gam_ref,    # (B*C, 1)    f32   BN gamma (batch tiled)
                bet_ref,    # (B*C, 1)    f32   BN beta  (batch tiled)
                wfbd_ref,   # (B*C, B*C)  bf16  kron(I_B, weight_fc.weight)
                wfb_ref,    # (B*C, 1)    f32   weight_fc bias (batch tiled)
                w1t_ref,    # (B*C, P)    f32   block-diag channel_fc conv1 (transposed)
                b1_ref,     # (1, P)      f32   channel_fc conv1 bias (tiled, zero pad)
                w2_ref,     # (B*C, P)    f32   block-diag channel_fc conv2
                b2_ref,     # (B*C, 1)    f32   channel_fc conv2 bias (batch tiled)
                out_ref,    # (B*C, H*W)
                *, B, C, H, W):
    f32 = jnp.float32
    bf16 = jnp.bfloat16
    HW = H * W

    x = x_ref[...].astype(f32)                              # (BC, HW)

    # ---------------- channel attention: GAP -> 1x1 -> ReLU -> 1x1 -> sigmoid
    pooled = jnp.mean(x, axis=1, keepdims=True)             # (BC, 1)
    h1 = jnp.sum(pooled * w1t_ref[...], axis=0, keepdims=True) + b1_ref[...]   # (1, P)
    h1 = jnp.maximum(h1, 0.0)
    cw = jax.nn.sigmoid(jnp.sum(w2_ref[...] * h1, axis=1, keepdims=True)
                        + b2_ref[...])                      # (BC, 1)

    # ---------------- depthwise 3x3 (halo via lane rolls + masks; dx hoisted)
    m = mask_ref[...]                                       # (4, HW)
    dwc = dwc_ref[...]                                      # (BC, 9)
    wc = lambda k: dwc[:, k:k + 1]                          # (BC, 1) per-channel tap

    xl = pltpu.roll(x, 1, axis=1) * m[0:1, :]               # source (i, j-1)
    xr = pltpu.roll(x, HW - 1, axis=1) * m[1:2, :]          # source (i, j+1)

    t0 = xl * wc(0) + x * wc(1) + xr * wc(2)                # ky=0  (dy=-1) row group
    t1 = xl * wc(3) + x * wc(4) + xr * wc(5)                # ky=1  (dy= 0)
    t2 = xl * wc(6) + x * wc(7) + xr * wc(8)                # ky=2  (dy=+1)

    acc = (t1
           + pltpu.roll(t0, W, axis=1) * m[2:3, :]          # pull row i-1 down
           + pltpu.roll(t2, HW - W, axis=1) * m[3:4, :])    # pull row i+1 up

    # ---------------- pointwise 1x1 conv on the MXU (bf16 in, f32 accumulate)
    sp = jnp.dot(pwbd_ref[...], acc.astype(bf16),
                 preferred_element_type=f32)                # (BC, HW)

    # ---------------- BatchNorm2d (training mode), one-pass stats in f32:
    # per-row sum & sum-of-squares packed into a (BC, 2) slab so the cross-batch
    # per-channel reduction is ONE sublane roll per extra batch, then the affine
    # normalization is folded into a per-row (scale, shift) -> one FMA/element.
    n = float(B * HW)
    rsum = jnp.sum(sp, axis=1, keepdims=True)               # (BC, 1)
    rsq = jnp.sum(sp * sp, axis=1, keepdims=True)           # (BC, 1)
    stats = jnp.concatenate([rsum, rsq], axis=1)            # (BC, 2)
    tot = stats
    for bb in range(1, B):                                  # cross-batch channel sum
        tot = tot + pltpu.roll(stats, bb * C, axis=0)
    mean = tot[:, 0:1] / n
    var = tot[:, 1:2] / n - mean * mean
    scale = gam_ref[...] * jax.lax.rsqrt(var + 1e-5)        # (BC, 1)
    shift = bet_ref[...] - mean * scale                     # (BC, 1)
    sw = jax.nn.sigmoid(sp * scale + shift)

    # ---------------- hybrid weight: 1x1 conv + sigmoid (bf16 MXU)
    hw = jax.nn.sigmoid(jnp.dot(wfbd_ref[...], x.astype(bf16),
                                preferred_element_type=f32) + wfb_ref[...])

    # ---------------- combine, factored: (cw + sw + hw) * x
    out_ref[...] = ((sw + hw + cw) * x).astype(out_ref.dtype)


# -----------------------------------------------------------------------------
# Host-side weight layout plumbing (done once, outside the per-call hot path).
# -----------------------------------------------------------------------------
def prepare_kernel_params(params, B, H, W):
    f32, bf16 = jnp.float32, jnp.bfloat16
    C = params["pw"].shape[0]
    Cr = params["w1"].shape[0]
    BC, HW = B * C, H * W
    ncrp = max(8, ((B * Cr + 7) // 8) * 8)          # padded lane width for the tiny FC
    eyeB = jnp.eye(B, dtype=f32)

    j = jnp.arange(HW, dtype=jnp.int32) % W
    i = jnp.arange(HW, dtype=jnp.int32) // W
    masks = jnp.stack([(j >= 1), (j <= W - 2), (i >= 1), (i <= H - 2)],
                      axis=0).astype(f32)           # (4, HW) halo validity masks

    def tile_col(v):                                # (1, C) -> (B*C, 1), batch tiled
        return jnp.tile(v.reshape(1, C), (B, 1)).reshape(BC, 1).astype(f32)

    def pad_lanes(a):
        return jnp.pad(a, ((0, 0), (0, ncrp - a.shape[1]))).astype(f32)

    return {
        "masks": masks,
        "dwc":   jnp.tile(params["dw"].T, (B, 1)).astype(f32),           # (BC, 9)
        "pwbd":  jnp.kron(eyeB, params["pw"]).astype(bf16),              # (BC, BC)
        "gamma": tile_col(params["gamma"]),
        "beta":  tile_col(params["beta"]),
        "wfbd":  jnp.kron(eyeB, params["wf_w"]).astype(bf16),            # (BC, BC)
        "wfb":   tile_col(params["wf_b"]),
        "w1t":   pad_lanes(jnp.kron(eyeB, params["w1"].T)),              # (BC, ncrp)
        "b1r":   pad_lanes(jnp.tile(params["b1"].reshape(1, Cr), (1, B))),  # (1, ncrp)
        "w2bd":  pad_lanes(jnp.kron(eyeB, params["w2"])),                # (BC, ncrp)
        "b2c":   tile_col(params["b2"]),
    }


# -----------------------------------------------------------------------------
# Wrapper: NCHW in / NCHW out. Reshapes only (no transpose, no pad).
# -----------------------------------------------------------------------------
def efficient_hybrid_attention(x_nchw, kp):
    B, C, H, W = x_nchw.shape
    BC, HW = B * C, H * W
    x2d = x_nchw.reshape(BC, HW)                     # free bitcast

    vmem = pl.BlockSpec(memory_space=pltpu.MemorySpace.VMEM)
    out2d = pl.pallas_call(
        partial(_eha_kernel, B=B, C=C, H=H, W=W),
        out_shape=jax.ShapeDtypeStruct((BC, HW), x_nchw.dtype),
        in_specs=[vmem] * 12,
        out_specs=vmem,
    )(x2d, kp["masks"], kp["dwc"], kp["pwbd"], kp["gamma"], kp["beta"],
      kp["wfbd"], kp["wfb"], kp["w1t"], kp["b1r"], kp["w2bd"], kp["b2c"])

    return out2d.reshape(B, C, H, W)                 # free bitcast


# -----------------------------------------------------------------------------
# Pure-JAX reference (NCHW, mirrors the PyTorch module) for correctness check.
# -----------------------------------------------------------------------------
def reference(x, p):
    B, C, H, W = x.shape
    pooled = jnp.mean(x, axis=(2, 3))                             # (B, C)
    h1 = jax.nn.relu(pooled @ p["w1"].T + p["b1"])                # (B, Cr)
    cw = jax.nn.sigmoid(h1 @ p["w2"].T + p["b2"])[:, :, None, None]

    dw_oihw = p["dw"].reshape(3, 3, C).transpose(2, 0, 1)[:, None, :, :]   # (C,1,3,3)
    sp = jax.lax.conv_general_dilated(
        x, dw_oihw, (1, 1), ((1, 1), (1, 1)),
        feature_group_count=C, dimension_numbers=("NCHW", "OIHW", "NCHW"))
    sp = jax.lax.conv_general_dilated(
        sp, p["pw"][:, :, None, None], (1, 1), ((0, 0), (0, 0)),
        dimension_numbers=("NCHW", "OIHW", "NCHW"))
    mean = jnp.mean(sp, axis=(0, 2, 3), keepdims=True)
    var = jnp.mean((sp - mean) ** 2, axis=(0, 2, 3), keepdims=True)
    spn = (sp - mean) / jnp.sqrt(var + 1e-5) * p["gamma"].reshape(1, C, 1, 1) \
          + p["beta"].reshape(1, C, 1, 1)
    sw = jax.nn.sigmoid(spn)

    hw = jax.nn.sigmoid(jnp.einsum("bchw,oc->bohw", x, p["wf_w"])
                        + p["wf_b"].reshape(1, C, 1, 1))
    return cw * x + sw * x + hw * x


def make_params(key, C, reduction=16):
    Cr = C // reduction
    ks = jax.random.split(key, 8)
    f32 = jnp.float32
    return {
        "w1":    0.2 * jax.random.normal(ks[0], (Cr, C), f32),
        "b1":    0.1 * jax.random.normal(ks[1], (1, Cr), f32),
        "w2":    0.2 * jax.random.normal(ks[2], (C, Cr), f32),
        "b2":    0.1 * jax.random.normal(ks[3], (1, C), f32),
        "dw":    0.2 * jax.random.normal(ks[4], (9, C), f32),
        "pw":    0.2 * jax.random.normal(ks[5], (C, C), f32),
        "gamma": jnp.ones((1, C), f32),
        "beta":  jnp.zeros((1, C), f32),
        "wf_w":  0.2 * jax.random.normal(ks[6], (C, C), f32),
        "wf_b":  0.1 * jax.random.normal(ks[7], (1, C), f32),
    }


if __name__ == "__main__":
    B, C, H, W = 2, 32, 16, 16            # reduction=16 -> hidden channels = 2
    key = jax.random.PRNGKey(0)
    kx, kparam = jax.random.split(key)
    x = jax.random.normal(kx, (B, C, H, W), jnp.float32)
    params = make_params(kparam, C, reduction=16)

    kparams = prepare_kernel_params(params, B, H, W)     # one-time layout plumbing
    out = jax.jit(efficient_hybrid_attention)(x, kparams)
    out = jax.block_until_ready(out)

    ref = reference(x, params)
    assert out.shape == ref.shape and out.dtype == ref.dtype
    err = jnp.max(jnp.abs(out - ref))
    # Tolerance accounts for the bf16 MXU matmuls (f32 accumulation, f32 BN stats).
    assert jnp.allclose(out, ref, rtol=2e-2, atol=2e-2), f"max abs err {err}"

    print("KERNEL_OK")
</pallas_src>

<mosaic_0001>
module attributes {stable_mosaic.version = 11 : i64} {
  func.func @_eha_kernel(%arg0: memref<64x256xf32, #tpu.memory_space<vmem>>, %arg1: memref<4x256xf32, #tpu.memory_space<vmem>>, %arg2: memref<64x9xf32, #tpu.memory_space<vmem>>, %arg3: memref<64x64xbf16, #tpu.memory_space<vmem>>, %arg4: memref<64x1xf32, #tpu.memory_space<vmem>>, %arg5: memref<64x1xf32, #tpu.memory_space<vmem>>, %arg6: memref<64x64xbf16, #tpu.memory_space<vmem>>, %arg7: memref<64x1xf32, #tpu.memory_space<vmem>>, %arg8: memref<64x8xf32, #tpu.memory_space<vmem>>, %arg9: memref<1x8xf32, #tpu.memory_space<vmem>>, %arg10: memref<64x8xf32, #tpu.memory_space<vmem>>, %arg11: memref<64x1xf32, #tpu.memory_space<vmem>>, %arg12: memref<64x256xf32, #tpu.memory_space<vmem>>) attributes {dimension_semantics = [], scalar_prefetch = 0 : i64, scratch_operands = 0 : i64, tpu.core_type = #tpu.core_type<tc>} {
    %c0 = arith.constant 0 : index
    %c0_0 = arith.constant 0 : index
    %0 = vector.load %arg0[%c0, %c0_0] : memref<64x256xf32, #tpu.memory_space<vmem>>, vector<64x256xf32>
    %cst = arith.constant dense<0.000000e+00> : vector<64xf32>
    %1 = vector.multi_reduction <add>, %0, %cst [1] : vector<64x256xf32> to vector<64xf32>
    %2 = vector.shape_cast %1 : vector<64xf32> to vector<64x1xf32>
    %cst_1 = arith.constant 2.560000e+02 : f32
    %3 = vector.broadcast %cst_1 : f32 to vector<64x1xf32>
    %4 = arith.divf %2, %3 : vector<64x1xf32>
    %c0_2 = arith.constant 0 : index
    %c0_3 = arith.constant 0 : index
    %5 = vector.load %arg8[%c0_2, %c0_3] : memref<64x8xf32, #tpu.memory_space<vmem>>, vector<64x8xf32>
    %6 = vector.broadcast %4 : vector<64x1xf32> to vector<64x8xf32>
    %7 = arith.mulf %6, %5 : vector<64x8xf32>
    %cst_4 = arith.constant dense<0.000000e+00> : vector<8xf32>
    %8 = vector.multi_reduction <add>, %7, %cst_4 [0] : vector<64x8xf32> to vector<8xf32>
    %9 = vector.shape_cast %8 : vector<8xf32> to vector<1x8xf32>
    %c0_5 = arith.constant 0 : index
    %c0_6 = arith.constant 0 : index
    %10 = vector.load %arg9[%c0_5, %c0_6] : memref<1x8xf32, #tpu.memory_space<vmem>>, vector<1x8xf32>
    %11 = arith.addf %9, %10 : vector<1x8xf32>
    %cst_7 = arith.constant 0.000000e+00 : f32
    %12 = vector.broadcast %cst_7 : f32 to vector<1x8xf32>
    %13 = arith.maximumf %11, %12 : vector<1x8xf32>
    %c0_8 = arith.constant 0 : index
    %c0_9 = arith.constant 0 : index
    %14 = vector.load %arg10[%c0_8, %c0_9] : memref<64x8xf32, #tpu.memory_space<vmem>>, vector<64x8xf32>
    %15 = vector.broadcast %13 : vector<1x8xf32> to vector<64x8xf32>
    %16 = arith.mulf %14, %15 : vector<64x8xf32>
    %cst_10 = arith.constant dense<0.000000e+00> : vector<64xf32>
    %17 = vector.multi_reduction <add>, %16, %cst_10 [1] : vector<64x8xf32> to vector<64xf32>
    %18 = vector.shape_cast %17 : vector<64xf32> to vector<64x1xf32>
    %c0_11 = arith.constant 0 : index
    %c0_12 = arith.constant 0 : index
    %19 = vector.load %arg11[%c0_11, %c0_12] : memref<64x1xf32, #tpu.memory_space<vmem>>, vector<64x1xf32>
    %20 = arith.addf %18, %19 : vector<64x1xf32>
    %21 = arith.negf %20 : vector<64x1xf32>
    %22 = math.exp %21 : vector<64x1xf32>
    %cst_13 = arith.constant 1.000000e+00 : f32
    %23 = vector.broadcast %cst_13 : f32 to vector<64x1xf32>
    %24 = arith.addf %23, %22 : vector<64x1xf32>
    %25 = arith.divf %23, %24 : vector<64x1xf32>
    %c0_14 = arith.constant 0 : index
    %c0_15 = arith.constant 0 : index
    %26 = vector.load %arg1[%c0_14, %c0_15] : memref<4x256xf32, #tpu.memory_space<vmem>>, vector<4x256xf32>
    %c0_16 = arith.constant 0 : index
    %c0_17 = arith.constant 0 : index
    %27 = vector.load %arg2[%c0_16, %c0_17] : memref<64x9xf32, #tpu.memory_space<vmem>>, vector<64x9xf32>
    %c1_i32 = arith.constant 1 : i32
    %28 = tpu.dynamic_rotate %0 by %c1_i32 dim 1 : vector<64x256xf32>, i32 -> vector<64x256xf32>
    %29 = vector.extract_strided_slice %26 {offsets = [0, 0], sizes = [1, 256], strides = [1, 1]} : vector<4x256xf32> to vector<1x256xf32>
    %30 = vector.broadcast %29 : vector<1x256xf32> to vector<64x256xf32>
    %31 = arith.mulf %28, %30 : vector<64x256xf32>
    %c255_i32 = arith.constant 255 : i32
    %32 = tpu.dynamic_rotate %0 by %c255_i32 dim 1 : vector<64x256xf32>, i32 -> vector<64x256xf32>
    %33 = vector.extract_strided_slice %26 {offsets = [1, 0], sizes = [1, 256], strides = [1, 1]} : vector<4x256xf32> to vector<1x256xf32>
    %34 = vector.broadcast %33 : vector<1x256xf32> to vector<64x256xf32>
    %35 = arith.mulf %32, %34 : vector<64x256xf32>
    %36 = vector.extract_strided_slice %27 {offsets = [0, 0], sizes = [64, 1], strides = [1, 1]} : vector<64x9xf32> to vector<64x1xf32>
    %37 = vector.broadcast %36 : vector<64x1xf32> to vector<64x256xf32>
    %38 = arith.mulf %31, %37 : vector<64x256xf32>
    %39 = vector.extract_strided_slice %27 {offsets = [0, 1], sizes = [64, 1], strides = [1, 1]} : vector<64x9xf32> to vector<64x1xf32>
    %40 = vector.broadcast %39 : vector<64x1xf32> to vector<64x256xf32>
    %41 = arith.mulf %0, %40 : vector<64x256xf32>
    %42 = arith.addf %38, %41 : vector<64x256xf32>
    %43 = vector.extract_strided_slice %27 {offsets = [0, 2], sizes = [64, 1], strides = [1, 1]} : vector<64x9xf32> to vector<64x1xf32>
    %44 = vector.broadcast %43 : vector<64x1xf32> to vector<64x256xf32>
    %45 = arith.mulf %35, %44 : vector<64x256xf32>
    %46 = arith.addf %42, %45 : vector<64x256xf32>
    %47 = vector.extract_strided_slice %27 {offsets = [0, 3], sizes = [64, 1], strides = [1, 1]} : vector<64x9xf32> to vector<64x1xf32>
    %48 = vector.broadcast %47 : vector<64x1xf32> to vector<64x256xf32>
    %49 = arith.mulf %31, %48 : vector<64x256xf32>
    %50 = vector.extract_strided_slice %27 {offsets = [0, 4], sizes = [64, 1], strides = [1, 1]} : vector<64x9xf32> to vector<64x1xf32>
    %51 = vector.broadcast %50 : vector<64x1xf32> to vector<64x256xf32>
    %52 = arith.mulf %0, %51 : vector<64x256xf32>
    %53 = arith.addf %49, %52 : vector<64x256xf32>
    %54 = vector.extract_strided_slice %27 {offsets = [0, 5], sizes = [64, 1], strides = [1, 1]} : vector<64x9xf32> to vector<64x1xf32>
    %55 = vector.broadcast %54 : vector<64x1xf32> to vector<64x256xf32>
    %56 = arith.mulf %35, %55 : vector<64x256xf32>
    %57 = arith.addf %53, %56 : vector<64x256xf32>
    %58 = vector.extract_strided_slice %27 {offsets = [0, 6], sizes = [64, 1], strides = [1, 1]} : vector<64x9xf32> to vector<64x1xf32>
    %59 = vector.broadcast %58 : vector<64x1xf32> to vector<64x256xf32>
    %60 = arith.mulf %31, %59 : vector<64x256xf32>
    %61 = vector.extract_strided_slice %27 {offsets = [0, 7], sizes = [64, 1], strides = [1, 1]} : vector<64x9xf32> to vector<64x1xf32>
    %62 = vector.broadcast %61 : vector<64x1xf32> to vector<64x256xf32>
    %63 = arith.mulf %0, %62 : vector<64x256xf32>
    %64 = arith.addf %60, %63 : vector<64x256xf32>
    %65 = vector.extract_strided_slice %27 {offsets = [0, 8], sizes = [64, 1], strides = [1, 1]} : vector<64x9xf32> to vector<64x1xf32>
    %66 = vector.broadcast %65 : vector<64x1xf32> to vector<64x256xf32>
    %67 = arith.mulf %35, %66 : vector<64x256xf32>
    %68 = arith.addf %64, %67 : vector<64x256xf32>
    %c16_i32 = arith.constant 16 : i32
    %69 = tpu.dynamic_rotate %46 by %c16_i32 dim 1 : vector<64x256xf32>, i32 -> vector<64x256xf32>
    %70 = vector.extract_strided_slice %26 {offsets = [2, 0], sizes = [1, 256], strides = [1, 1]} : vector<4x256xf32> to vector<1x256xf32>
    %71 = vector.broadcast %70 : vector<1x256xf32> to vector<64x256xf32>
    %72 = arith.mulf %69, %71 : vector<64x256xf32>
    %73 = arith.addf %57, %72 : vector<64x256xf32>
    %c240_i32 = arith.constant 240 : i32
    %74 = tpu.dynamic_rotate %68 by %c240_i32 dim 1 : vector<64x256xf32>, i32 -> vector<64x256xf32>
    %75 = vector.extract_strided_slice %26 {offsets = [3, 0], sizes = [1, 256], strides = [1, 1]} : vector<4x256xf32> to vector<1x256xf32>
    %76 = vector.broadcast %75 : vector<1x256xf32> to vector<64x256xf32>
    %77 = arith.mulf %74, %76 : vector<64x256xf32>
    %78 = arith.addf %73, %77 : vector<64x256xf32>
    %c0_18 = arith.constant 0 : index
    %c0_19 = arith.constant 0 : index
    %79 = vector.load %arg3[%c0_18, %c0_19] : memref<64x64xbf16, #tpu.memory_space<vmem>>, vector<64x64xbf16>
    %80 = arith.truncf %78 : vector<64x256xf32> to vector<64x256xbf16>
    %cst_20 = arith.constant dense<0.000000e+00> : vector<64x256xf32>
    %81 = tpu.matmul %79, %80, %cst_20 {dimension_numbers = #tpu.dot_dimension_numbers<[1], [0], [0], [1], [0, 0, 1, 1], [], []>} : vector<64x64xbf16>, vector<64x256xbf16>, vector<64x256xf32> -> vector<64x256xf32>
    %cst_21 = arith.constant dense<0.000000e+00> : vector<64xf32>
    %82 = vector.multi_reduction <add>, %81, %cst_21 [1] : vector<64x256xf32> to vector<64xf32>
    %83 = vector.shape_cast %82 : vector<64xf32> to vector<64x1xf32>
    %84 = arith.mulf %81, %81 : vector<64x256xf32>
    %cst_22 = arith.constant dense<0.000000e+00> : vector<64xf32>
    %85 = vector.multi_reduction <add>, %84, %cst_22 [1] : vector<64x256xf32> to vector<64xf32>
    %86 = vector.shape_cast %85 : vector<64xf32> to vector<64x1xf32>
    %87 = tpu.concatenate %83, %86 in 1 : vector<64x1xf32>, vector<64x1xf32> -> vector<64x2xf32>
    %c32_i32 = arith.constant 32 : i32
    %88 = tpu.dynamic_rotate %87 by %c32_i32 dim 0 : vector<64x2xf32>, i32 -> vector<64x2xf32>
    %89 = arith.addf %87, %88 : vector<64x2xf32>
    %90 = vector.extract_strided_slice %89 {offsets = [0, 0], sizes = [64, 1], strides = [1, 1]} : vector<64x2xf32> to vector<64x1xf32>
    %cst_23 = arith.constant 5.120000e+02 : f32
    %91 = vector.broadcast %cst_23 : f32 to vector<64x1xf32>
    %92 = arith.divf %90, %91 : vector<64x1xf32>
    %93 = vector.extract_strided_slice %89 {offsets = [0, 1], sizes = [64, 1], strides = [1, 1]} : vector<64x2xf32> to vector<64x1xf32>
    %cst_24 = arith.constant 5.120000e+02 : f32
    %94 = vector.broadcast %cst_24 : f32 to vector<64x1xf32>
    %95 = arith.divf %93, %94 : vector<64x1xf32>
    %96 = arith.mulf %92, %92 : vector<64x1xf32>
    %97 = arith.subf %95, %96 : vector<64x1xf32>
    %c0_25 = arith.constant 0 : index
    %c0_26 = arith.constant 0 : index
    %98 = vector.load %arg4[%c0_25, %c0_26] : memref<64x1xf32, #tpu.memory_space<vmem>>, vector<64x1xf32>
    %cst_27 = arith.constant 9.99999974E-6 : f32
    %99 = vector.broadcast %cst_27 : f32 to vector<64x1xf32>
    %100 = arith.addf %97, %99 : vector<64x1xf32>
    %101 = math.rsqrt %100 : vector<64x1xf32>
    %102 = arith.mulf %98, %101 : vector<64x1xf32>
    %c0_28 = arith.constant 0 : index
    %c0_29 = arith.constant 0 : index
    %103 = vector.load %arg5[%c0_28, %c0_29] : memref<64x1xf32, #tpu.memory_space<vmem>>, vector<64x1xf32>
    %104 = arith.mulf %92, %102 : vector<64x1xf32>
    %105 = arith.subf %103, %104 : vector<64x1xf32>
    %106 = vector.broadcast %102 : vector<64x1xf32> to vector<64x256xf32>
    %107 = arith.mulf %81, %106 : vector<64x256xf32>
    %108 = vector.broadcast %105 : vector<64x1xf32> to vector<64x256xf32>
    %109 = arith.addf %107, %108 : vector<64x256xf32>
    %110 = arith.negf %109 : vector<64x256xf32>
    %111 = math.exp %110 : vector<64x256xf32>
    %cst_30 = arith.constant 1.000000e+00 : f32
    %112 = vector.broadcast %cst_30 : f32 to vector<64x256xf32>
    %113 = arith.addf %112, %111 : vector<64x256xf32>
    %114 = arith.divf %112, %113 : vector<64x256xf32>
    %c0_31 = arith.constant 0 : index
    %c0_32 = arith.constant 0 : index
    %115 = vector.load %arg6[%c0_31, %c0_32] : memref<64x64xbf16, #tpu.memory_space<vmem>>, vector<64x64xbf16>
    %116 = arith.truncf %0 : vector<64x256xf32> to vector<64x256xbf16>
    %cst_33 = arith.constant dense<0.000000e+00> : vector<64x256xf32>
    %117 = tpu.matmul %115, %116, %cst_33 {dimension_numbers = #tpu.dot_dimension_numbers<[1], [0], [0], [1], [0, 0, 1, 1], [], []>} : vector<64x64xbf16>, vector<64x256xbf16>, vector<64x256xf32> -> vector<64x256xf32>
    %c0_34 = arith.constant 0 : index
    %c0_35 = arith.constant 0 : index
    %118 = vector.load %arg7[%c0_34, %c0_35] : memref<64x1xf32, #tpu.memory_space<vmem>>, vector<64x1xf32>
    %119 = vector.broadcast %118 : vector<64x1xf32> to vector<64x256xf32>
    %120 = arith.addf %117, %119 : vector<64x256xf32>
    %121 = arith.negf %120 : vector<64x256xf32>
    %122 = math.exp %121 : vector<64x256xf32>
    %cst_36 = arith.constant 1.000000e+00 : f32
    %123 = vector.broadcast %cst_36 : f32 to vector<64x256xf32>
    %124 = arith.addf %123, %122 : vector<64x256xf32>
    %125 = arith.divf %123, %124 : vector<64x256xf32>
    %126 = arith.addf %114, %125 : vector<64x256xf32>
    %127 = vector.broadcast %25 : vector<64x1xf32> to vector<64x256xf32>
    %128 = arith.addf %126, %127 : vector<64x256xf32>
    %129 = arith.mulf %128, %0 : vector<64x256xf32>
    %c0_37 = arith.constant 0 : index
    %c0_38 = arith.constant 0 : index
    %130 = vector.load %arg12[%c0_37, %c0_38] : memref<64x256xf32, #tpu.memory_space<vmem>>, vector<64x256xf32>
    tpu.vector_store %arg12[%c0_37, %c0_38], %129 {strides = array<i32>} : memref<64x256xf32, #tpu.memory_space<vmem>>, vector<64x256xf32>,
    return
  }
}

</mosaic_0001>

<llo_original>
// kernel: efficient_hybrid_attention.1
$region0: #{efficient_hybrid_attention.1}
  #allocation0 [shape = 'u32[]', space=smem, size = 0x4, offset = 0x4, fixed_abs, tag = 'smem constant byte address 0x4 - core index']
  #allocation1 [shape = 'u32[72,128]{1,0:T(1,128)}', space=vmem, size = 0x9000, scoped, tag = 'internal scratch']
  %s0 = inlined_call_operand.vmem [shape: f32[64,256], index: 0, kind: input, shape index: {}]
  %s1 = inlined_call_operand.vmem [shape: f32[4,256], index: 1, kind: input, shape index: {}]
  %s2 = inlined_call_operand.vmem [shape: f32[64,9], index: 2, kind: input, shape index: {}]
  %s3 = inlined_call_operand.vmem [shape: bf16[64,64], index: 3, kind: input, shape index: {}]
  %s4 = inlined_call_operand.vmem [shape: f32[64,1], index: 4, kind: input, shape index: {}]
  %s5 = inlined_call_operand.vmem [shape: f32[64,1], index: 5, kind: input, shape index: {}]
  %s6 = inlined_call_operand.vmem [shape: bf16[64,64], index: 6, kind: input, shape index: {}]
  %s7 = inlined_call_operand.vmem [shape: f32[64,1], index: 7, kind: input, shape index: {}]
  %s8 = inlined_call_operand.vmem [shape: f32[64,8], index: 8, kind: input, shape index: {}]
  %s9 = inlined_call_operand.vmem [shape: f32[1,8], index: 9, kind: input, shape index: {}]
  %s10 = inlined_call_operand.vmem [shape: f32[64,8], index: 10, kind: input, shape index: {}]
  %s11 = inlined_call_operand.vmem [shape: f32[64,1], index: 11, kind: input, shape index: {}]
  %s12 = inlined_call_operand.vmem [shape: f32[64,256], index: 12, kind: output, shape index: {}]
  %s13 = sld [smem:[#allocation0]]
  $region58: #{efficient_hybrid_attention.1} parent=0
    _
  %s15 = ssub.s32 1, %s13
  %s16 = scalar_select 0, %s15, %s13
  // Predicated region
  $region2: #{efficient_hybrid_attention.1} parent=0 // pred_check
    _
  $region3: #{efficient_hybrid_attention.1} parent=0 // pred_check_branch
    %18 = sbr.rel (0) target = $region5
  $region4: #{efficient_hybrid_attention.1} parent=0 // pred_region
    _
  $region5: #{efficient_hybrid_attention.1} parent=0 // pred_fallthru
    _
  // Predicated region
  $region6: #{efficient_hybrid_attention.1} parent=0 // pred_check
    _
  $region7: #{efficient_hybrid_attention.1} parent=0 // pred_check_branch
    %20 = sbr.rel (0) target = $region9
  $region8: #{efficient_hybrid_attention.1} parent=0 // pred_region
    _
  $region9: #{efficient_hybrid_attention.1} parent=0 // pred_fallthru
    _
  // Predicated region
  $region10: #{efficient_hybrid_attention.1} parent=0 // pred_check
    _
  $region11: #{efficient_hybrid_attention.1} parent=0 // pred_check_branch
    %22 = sbr.rel (0) target = $region13
  $region12: #{efficient_hybrid_attention.1} parent=0 // pred_region
    _
  $region13: #{efficient_hybrid_attention.1} parent=0 // pred_fallthru
    _
  // Predicated region
  $region14: #{efficient_hybrid_attention.1} parent=0 // pred_check
    _
  $region15: #{efficient_hybrid_attention.1} parent=0 // pred_check_branch
    %24 = sbr.rel (0) target = $region17
  $region16: #{efficient_hybrid_attention.1} parent=0 // pred_region
    _
  $region17: #{efficient_hybrid_attention.1} parent=0 // pred_fallthru
    _
  // Predicated region
  $region18: #{efficient_hybrid_attention.1} parent=0 // pred_check
    _
  $region19: #{efficient_hybrid_attention.1} parent=0 // pred_check_branch
    %26 = sbr.rel (0) target = $region21
  $region20: #{efficient_hybrid_attention.1} parent=0 // pred_region
    _
  $region21: #{efficient_hybrid_attention.1} parent=0 // pred_fallthru
    _
  // Predicated region
  $region22: #{efficient_hybrid_attention.1} parent=0 // pred_check
    _
  $region23: #{efficient_hybrid_attention.1} parent=0 // pred_check_branch
    %28 = sbr.rel (0) target = $region25
  $region24: #{efficient_hybrid_attention.1} parent=0 // pred_region
    _
  $region25: #{efficient_hybrid_attention.1} parent=0 // pred_fallthru
    _
  // Predicated region
  $region26: #{efficient_hybrid_attention.1} parent=0 // pred_check
    _
  $region27: #{efficient_hybrid_attention.1} parent=0 // pred_check_branch
    %30 = sbr.rel (0) target = $region29
  $region28: #{efficient_hybrid_attention.1} parent=0 // pred_region
    _
  $region29: #{efficient_hybrid_attention.1} parent=0 // pred_fallthru
    _
  // Predicated region
  $region30: #{efficient_hybrid_attention.1} parent=0 // pred_check
    _
  $region31: #{efficient_hybrid_attention.1} parent=0 // pred_check_branch
    %32 = sbr.rel (0) target = $region33
  $region32: #{efficient_hybrid_attention.1} parent=0 // pred_region
    _
  $region33: #{efficient_hybrid_attention.1} parent=0 // pred_fallthru
    _
  // Predicated region
  $region34: #{efficient_hybrid_attention.1} parent=0 // pred_check
    _
  $region35: #{efficient_hybrid_attention.1} parent=0 // pred_check_branch
    %34 = sbr.rel (0) target = $region37
  $region36: #{efficient_hybrid_attention.1} parent=0 // pred_region
    _
  $region37: #{efficient_hybrid_attention.1} parent=0 // pred_fallthru
    _
  // Predicated region
  $region38: #{efficient_hybrid_attention.1} parent=0 // pred_check
    _
  $region39: #{efficient_hybrid_attention.1} parent=0 // pred_check_branch
    %36 = sbr.rel (0) target = $region41
  $region40: #{efficient_hybrid_attention.1} parent=0 // pred_region
    _
  $region41: #{efficient_hybrid_attention.1} parent=0 // pred_fallthru
    _
  // Predicated region
  $region42: #{efficient_hybrid_attention.1} parent=0 // pred_check
    _
  $region43: #{efficient_hybrid_attention.1} parent=0 // pred_check_branch
    %38 = sbr.rel (0) target = $region45
  $region44: #{efficient_hybrid_attention.1} parent=0 // pred_region
    _
  $region45: #{efficient_hybrid_attention.1} parent=0 // pred_fallthru
    _
  // Predicated region
  $region46: #{efficient_hybrid_attention.1} parent=0 // pred_check
    _
  $region47: #{efficient_hybrid_attention.1} parent=0 // pred_check_branch
    %40 = sbr.rel (0) target = $region49
  $region48: #{efficient_hybrid_attention.1} parent=0 // pred_region
    _
  $region49: #{efficient_hybrid_attention.1} parent=0 // pred_fallthru
    _
  %v42 = vld [vmem:[%s0] sm:$0xff]
  %v43 = vld [vmem:[%s0 + $0x8] sm:$0xff]
  %v44 = vld [vmem:[%s0 + $0x10] sm:$0xff]
  %v45 = vld [vmem:[%s0 + $0x18] sm:$0xff]
  %v46 = vld [vmem:[%s0 + $0x20] sm:$0xff]
  %v47 = vld [vmem:[%s0 + $0x28] sm:$0xff]
  %v48 = vld [vmem:[%s0 + $0x30] sm:$0xff]
  %v49 = vld [vmem:[%s0 + $0x38] sm:$0xff]
  %v50 = vld [vmem:[%s0 + $0x40] sm:$0xff]
  %v51 = vld [vmem:[%s0 + $0x48] sm:$0xff]
  %v52 = vld [vmem:[%s0 + $0x50] sm:$0xff]
  %v53 = vld [vmem:[%s0 + $0x58] sm:$0xff]
  %v54 = vld [vmem:[%s0 + $0x60] sm:$0xff]
  %v55 = vld [vmem:[%s0 + $0x68] sm:$0xff]
  %v56 = vld [vmem:[%s0 + $0x70] sm:$0xff]
  %v57 = vld [vmem:[%s0 + $0x78] sm:$0xff]
  %v58 = vadd.f32 %v42, %v43
  %59 = vadd.xlane.f32.xlu0 %v58
  %v60 = vpop.xlane.xlu0 %59
  %v61 = vadd.f32 %v44, %v45
  %62 = vadd.xlane.f32.xlu0 %v61
  %v63 = vpop.xlane.xlu0 %62
  %v64 = vadd.f32 %v46, %v47
  %65 = vadd.xlane.f32.xlu0 %v64
  %v66 = vpop.xlane.xlu0 %65
  %v67 = vadd.f32 %v48, %v49
  %68 = vadd.xlane.f32.xlu0 %v67
  %v69 = vpop.xlane.xlu0 %68
  %v70 = vadd.f32 %v50, %v51
  %71 = vadd.xlane.f32.xlu0 %v70
  %v72 = vpop.xlane.xlu0 %71
  %v73 = vadd.f32 %v52, %v53
  %74 = vadd.xlane.f32.xlu0 %v73
  %v75 = vpop.xlane.xlu0 %74
  %v76 = vadd.f32 %v54, %v55
  %77 = vadd.xlane.f32.xlu0 %v76
  %v78 = vpop.xlane.xlu0 %77
  %v79 = vadd.f32 %v56, %v57
  %80 = vadd.xlane.f32.xlu0 %v79
  %v81 = vpop.xlane.xlu0 %80
  %v82 = vrcp.pop 256.0
  %v83 = vmul.f32 256.0, %v82
  %v84 = vsub.f32 1.0, %v83
  %v85 = vmul.f32 %v82, %v84
  %v86 = vadd.f32 %v82, %v85
  %vm87 = vweird.f32 %v82
  %v88 = vsel %vm87, %v82, %v86
  %v89 = vmul.f32 %v60, %v88
  %v90 = vmul.f32 %v63, %v88
  %v91 = vmul.f32 %v66, %v88
  %v92 = vmul.f32 %v69, %v88
  %v93 = vmul.f32 %v72, %v88
  %v94 = vmul.f32 %v75, %v88
  %v95 = vmul.f32 %v78, %v88
  %v96 = vmul.f32 %v81, %v88
  %v97 = vld [vmem:[%s8] sm:$0xff]
  %v98 = vld [vmem:[%s8 + $0x8] sm:$0xff]
  %v99 = vld [vmem:[%s8 + $0x10] sm:$0xff]
  %v100 = vld [vmem:[%s8 + $0x18] sm:$0xff]
  %v101 = vld [vmem:[%s8 + $0x20] sm:$0xff]
  %v102 = vld [vmem:[%s8 + $0x28] sm:$0xff]
  %v103 = vld [vmem:[%s8 + $0x30] sm:$0xff]
  %v104 = vld [vmem:[%s8 + $0x38] sm:$0xff]
  %v105 = vmul.f32 %v89, %v97
  %v106 = vmul.f32 %v90, %v98
  %v107 = vmul.f32 %v91, %v99
  %v108 = vmul.f32 %v92, %v100
  %v109 = vmul.f32 %v93, %v101
  %v110 = vmul.f32 %v94, %v102
  %v111 = vmul.f32 %v95, %v103
  %v112 = vmul.f32 %v96, %v104
  %vm113 = vcmask 64512
  %v114 = vsel %vm113, %v105, 0.0
  %v115 = vsel %vm113, %v106, 0.0
  %v116 = vadd.f32 %v114, %v115
  %v117 = vsel %vm113, %v107, 0.0
  %v118 = vadd.f32 %v116, %v117
  %v119 = vsel %vm113, %v108, 0.0
  %v120 = vadd.f32 %v118, %v119
  %v121 = vsel %vm113, %v109, 0.0
  %v122 = vadd.f32 %v120, %v121
  %v123 = vsel %vm113, %v110, 0.0
  %v124 = vadd.f32 %v122, %v123
  %v125 = vsel %vm113, %v111, 0.0
  %v126 = vadd.f32 %v124, %v125
  %v127 = vsel %vm113, %v112, 0.0
  %v128 = vadd.f32 %v126, %v127
  %v129 = vrot.slane %v128, 4
  %v130 = vadd.f32 %v128, %v129
  %v131 = vrot.slane %v130, 2
  %v132 = vadd.f32 %v130, %v131
  %v133 = vrot.slane %v132, 1
  %v134 = vadd.f32 %v132, %v133
  %v135 = vld [vmem:[%s9] sm:$0x1]
  %v136 = vadd.f32 %v134, %v135
  %v137 = vmax.f32 %v136, 0.0
  %v138 = vld [vmem:[%s10] sm:$0xff]
  %v139 = vld [vmem:[%s10 + $0x8] sm:$0xff]
  %v140 = vld [vmem:[%s10 + $0x10] sm:$0xff]
  %v141 = vld [vmem:[%s10 + $0x18] sm:$0xff]
  %v142 = vld [vmem:[%s10 + $0x20] sm:$0xff]
  %v143 = vld [vmem:[%s10 + $0x28] sm:$0xff]
  %v144 = vld [vmem:[%s10 + $0x30] sm:$0xff]
  %v145 = vld [vmem:[%s10 + $0x38] sm:$0xff]
  %v146 = vperm.slane %v137, 0
  %v147 = vmul.f32 %v138, %v146
  %v148 = vmul.f32 %v139, %v146
  %v149 = vmul.f32 %v140, %v146
  %v150 = vmul.f32 %v141, %v146
  %v151 = vmul.f32 %v142, %v146
  %v152 = vmul.f32 %v143, %v146
  %v153 = vmul.f32 %v144, %v146
  %v154 = vmul.f32 %v145, %v146
  %v155 = vsel %vm113, %v147, 0.0
  %156 = vadd.xlane.f32.xlu0 %v155
  %v157 = vpop.xlane.xlu0 %156
  %v158 = vsel %vm113, %v148, 0.0
  %159 = vadd.xlane.f32.xlu0 %v158
  %v160 = vpop.xlane.xlu0 %159
  %v161 = vsel %vm113, %v149, 0.0
  %162 = vadd.xlane.f32.xlu0 %v161
  %v163 = vpop.xlane.xlu0 %162
  %v164 = vsel %vm113, %v150, 0.0
  %165 = vadd.xlane.f32.xlu0 %v164
  %v166 = vpop.xlane.xlu0 %165
  %v167 = vsel %vm113, %v151, 0.0
  %168 = vadd.xlane.f32.xlu0 %v167
  %v169 = vpop.xlane.xlu0 %168
  %v170 = vsel %vm113, %v152, 0.0
  %171 = vadd.xlane.f32.xlu0 %v170
  %v172 = vpop.xlane.xlu0 %171
  %v173 = vsel %vm113, %v153, 0.0
  %174 = vadd.xlane.f32.xlu0 %v173
  %v175 = vpop.xlane.xlu0 %174
  %v176 = vsel %vm113, %v154, 0.0
  %177 = vadd.xlane.f32.xlu0 %v176
  %v178 = vpop.xlane.xlu0 %177
  %v179 = vld [vmem:[%s11] sm:$0xff]
  %v180 = vld [vmem:[%s11 + $0x8] sm:$0xff]
  %v181 = vld [vmem:[%s11 + $0x10] sm:$0xff]
  %v182 = vld [vmem:[%s11 + $0x18] sm:$0xff]
  %v183 = vld [vmem:[%s11 + $0x20] sm:$0xff]
  %v184 = vld [vmem:[%s11 + $0x28] sm:$0xff]
  %v185 = vld [vmem:[%s11 + $0x30] sm:$0xff]
  %v186 = vld [vmem:[%s11 + $0x38] sm:$0xff]
  %v187 = vadd.f32 %v157, %v179
  %v188 = vadd.f32 %v160, %v180
  %v189 = vadd.f32 %v163, %v181
  %v190 = vadd.f32 %v166, %v182
  %v191 = vadd.f32 %v169, %v183
  %v192 = vadd.f32 %v172, %v184
  %v193 = vadd.f32 %v175, %v185
  %v194 = vadd.f32 %v178, %v186
  %v195 = vxor.u32 %v187, 2147483648
  %v196 = vxor.u32 %v188, 2147483648
  %v197 = vxor.u32 %v189, 2147483648
  %v198 = vxor.u32 %v190, 2147483648
  %v199 = vxor.u32 %v191, 2147483648
  %v200 = vxor.u32 %v192, 2147483648
  %v201 = vxor.u32 %v193, 2147483648
  %v202 = vxor.u32 %v194, 2147483648
  %v203 = vmul.f32 %v195, 1.442695
  %v204 = vpow.pop %v203
  %v205 = vmul.f32 %v196, 1.442695
  %v206 = vpow.pop %v205
  %v207 = vmul.f32 %v197, 1.442695
  %v208 = vpow.pop %v207
  %v209 = vmul.f32 %v198, 1.442695
  %v210 = vpow.pop %v209
  %v211 = vmul.f32 %v199, 1.442695
  %v212 = vpow.pop %v211
  %v213 = vmul.f32 %v200, 1.442695
  %v214 = vpow.pop %v213
  %v215 = vmul.f32 %v201, 1.442695
  %v216 = vpow.pop %v215
  %v217 = vmul.f32 %v202, 1.442695
  %v218 = vpow.pop %v217
  %v219 = vadd.f32 %v204, 1.0
  %v220 = vadd.f32 %v206, 1.0
  %v221 = vadd.f32 %v208, 1.0
  %v222 = vadd.f32 %v210, 1.0
  %v223 = vadd.f32 %v212, 1.0
  %v224 = vadd.f32 %v214, 1.0
  %v225 = vadd.f32 %v216, 1.0
  %v226 = vadd.f32 %v218, 1.0
  %v227 = vrcp.pop %v219
  %v228 = vmul.f32 %v219, %v227
  %v229 = vsub.f32 1.0, %v228
  %v230 = vmul.f32 %v227, %v229
  %v231 = vadd.f32 %v227, %v230
  %vm232 = vweird.f32 %v219
  %vm233 = vweird.f32 %v227
  %vm234 = vmor %vm232, %vm233
  %v235 = vsel %vm234, %v227, %v231
  %v236 = vand.u32 2147483647, %v219
  %vm237 = vcmp.eq.f32.partialorder %v236, 8.507059e+37
  %v238 = vand.u32 %v219, 2147483648
  %v239 = vor.u32 1.1754944e-38, %v238
  %v240 = vsel %vm237, %v239, %v235
  %v241 = vmul.f32 1.0, %v240
  %v242 = vrcp.pop %v220
  %v243 = vmul.f32 %v220, %v242
  %v244 = vsub.f32 1.0, %v243
  %v245 = vmul.f32 %v242, %v244
  %v246 = vadd.f32 %v242, %v245
  %vm247 = vweird.f32 %v220
  %vm248 = vweird.f32 %v242
  %vm249 = vmor %vm247, %vm248
  %v250 = vsel %vm249, %v242, %v246
  %v251 = vand.u32 2147483647, %v220
  %vm252 = vcmp.eq.f32.partialorder %v251, 8.507059e+37
  %v253 = vand.u32 %v220, 2147483648
  %v254 = vor.u32 1.1754944e-38, %v253
  %v255 = vsel %vm252, %v254, %v250
  %v256 = vmul.f32 1.0, %v255
  %v257 = vrcp.pop %v221
  %v258 = vmul.f32 %v221, %v257
  %v259 = vsub.f32 1.0, %v258
  %v260 = vmul.f32 %v257, %v259
  %v261 = vadd.f32 %v257, %v260
  %vm262 = vweird.f32 %v221
  %vm263 = vweird.f32 %v257
  %vm264 = vmor %vm262, %vm263
  %v265 = vsel %vm264, %v257, %v261
  %v266 = vand.u32 2147483647, %v221
  %vm267 = vcmp.eq.f32.partialorder %v266, 8.507059e+37
  %v268 = vand.u32 %v221, 2147483648
  %v269 = vor.u32 1.1754944e-38, %v268
  %v270 = vsel %vm267, %v269, %v265
  %v271 = vmul.f32 1.0, %v270
  %v272 = vrcp.pop %v222
  %v273 = vmul.f32 %v222, %v272
  %v274 = vsub.f32 1.0, %v273
  %v275 = vmul.f32 %v272, %v274
  %v276 = vadd.f32 %v272, %v275
  %vm277 = vweird.f32 %v222
  %vm278 = vweird.f32 %v272
  %vm279 = vmor %vm277, %vm278
  %v280 = vsel %vm279, %v272, %v276
  %v281 = vand.u32 2147483647, %v222
  %vm282 = vcmp.eq.f32.partialorder %v281, 8.507059e+37
  %v283 = vand.u32 %v222, 2147483648
  %v284 = vor.u32 1.1754944e-38, %v283
  %v285 = vsel %vm282, %v284, %v280
  %v286 = vmul.f32 1.0, %v285
  %v287 = vrcp.pop %v223
  %v288 = vmul.f32 %v223, %v287
  %v289 = vsub.f32 1.0, %v288
  %v290 = vmul.f32 %v287, %v289
  %v291 = vadd.f32 %v287, %v290
  %vm292 = vweird.f32 %v223
  %vm293 = vweird.f32 %v287
  %vm294 = vmor %vm292, %vm293
  %v295 = vsel %vm294, %v287, %v291
  %v296 = vand.u32 2147483647, %v223
  %vm297 = vcmp.eq.f32.partialorder %v296, 8.507059e+37
  %v298 = vand.u32 %v223, 2147483648
  %v299 = vor.u32 1.1754944e-38, %v298
  %v300 = vsel %vm297, %v299, %v295
  %v301 = vmul.f32 1.0, %v300
  %v302 = vrcp.pop %v224
  %v303 = vmul.f32 %v224, %v302
  %v304 = vsub.f32 1.0, %v303
  %v305 = vmul.f32 %v302, %v304
  %v306 = vadd.f32 %v302, %v305
  %vm307 = vweird.f32 %v224
  %vm308 = vweird.f32 %v302
  %vm309 = vmor %vm307, %vm308
  %v310 = vsel %vm309, %v302, %v306
  %v311 = vand.u32 2147483647, %v224
  %vm312 = vcmp.eq.f32.partialorder %v311, 8.507059e+37
  %v313 = vand.u32 %v224, 2147483648
  %v314 = vor.u32 1.1754944e-38, %v313
  %v315 = vsel %vm312, %v314, %v310
  %v316 = vmul.f32 1.0, %v315
  %v317 = vrcp.pop %v225
  %v318 = vmul.f32 %v225, %v317
  %v319 = vsub.f32 1.0, %v318
  %v320 = vmul.f32 %v317, %v319
  %v321 = vadd.f32 %v317, %v320
  %vm322 = vweird.f32 %v225
  %vm323 = vweird.f32 %v317
  %vm324 = vmor %vm322, %vm323
  %v325 = vsel %vm324, %v317, %v321
  %v326 = vand.u32 2147483647, %v225
  %vm327 = vcmp.eq.f32.partialorder %v326, 8.507059e+37
  %v328 = vand.u32 %v225, 2147483648
  %v329 = vor.u32 1.1754944e-38, %v328
  %v330 = vsel %vm327, %v329, %v325
  %v331 = vmul.f32 1.0, %v330
  %v332 = vrcp.pop %v226
  %v333 = vmul.f32 %v226, %v332
  %v334 = vsub.f32 1.0, %v333
  %v335 = vmul.f32 %v332, %v334
  %v336 = vadd.f32 %v332, %v335
  %vm337 = vweird.f32 %v226
  %vm338 = vweird.f32 %v332
  %vm339 = vmor %vm337, %vm338
  %v340 = vsel %vm339, %v332, %v336
  %v341 = vand.u32 2147483647, %v226
  %vm342 = vcmp.eq.f32.partialorder %v341, 8.507059e+37
  %v343 = vand.u32 %v226, 2147483648
  %v344 = vor.u32 1.1754944e-38, %v343
  %v345 = vsel %vm342, %v344, %v340
  %v346 = vmul.f32 1.0, %v345
  %v347 = vld [vmem:[%s1] sm:$0xff]
  %v348 = vld [vmem:[%s2] sm:$0xff]
  %v349 = vld [vmem:[%s2 + $0x8] sm:$0xff]
  %v350 = vld [vmem:[%s2 + $0x10] sm:$0xff]
  %v351 = vld [vmem:[%s2 + $0x18] sm:$0xff]
  %v352 = vld [vmem:[%s2 + $0x20] sm:$0xff]
  %v353 = vld [vmem:[%s2 + $0x28] sm:$0xff]
  %v354 = vld [vmem:[%s2 + $0x30] sm:$0xff]
  %v355 = vld [vmem:[%s2 + $0x38] sm:$0xff]
  %356 = vrot.lane.b32.xlu0 %v42, 1
  %v357 = vpop.permute.xlu0 %356
  %358 = vrot.lane.b32.xlu0 %v44, 1
  %v359 = vpop.permute.xlu0 %358
  %360 = vrot.lane.b32.xlu0 %v46, 1
  %v361 = vpop.permute.xlu0 %360
  %362 = vrot.lane.b32.xlu0 %v48, 1
  %v363 = vpop.permute.xlu0 %362
  %364 = vrot.lane.b32.xlu0 %v50, 1
  %v365 = vpop.permute.xlu0 %364
  %366 = vrot.lane.b32.xlu0 %v52, 1
  %v367 = vpop.permute.xlu0 %366
  %368 = vrot.lane.b32.xlu0 %v54, 1
  %v369 = vpop.permute.xlu0 %368
  %370 = vrot.lane.b32.xlu0 %v56, 1
  %v371 = vpop.permute.xlu0 %370
  %372 = vrot.lane.b32.xlu0 %v43, 1
  %v373 = vpop.permute.xlu0 %372
  %374 = vrot.lane.b32.xlu0 %v45, 1
  %v375 = vpop.permute.xlu0 %374
  %376 = vrot.lane.b32.xlu0 %v47, 1
  %v377 = vpop.permute.xlu0 %376
  %378 = vrot.lane.b32.xlu0 %v49, 1
  %v379 = vpop.permute.xlu0 %378
  %380 = vrot.lane.b32.xlu0 %v51, 1
  %v381 = vpop.permute.xlu0 %380
  %382 = vrot.lane.b32.xlu0 %v53, 1
  %v383 = vpop.permute.xlu0 %382
  %384 = vrot.lane.b32.xlu0 %v55, 1
  %v385 = vpop.permute.xlu0 %384
  %386 = vrot.lane.b32.xlu0 %v57, 1
  %v387 = vpop.permute.xlu0 %386
  %v388 = vlaneseq
  %v389 = vand.u32 %v388, 127
  %vm390 = vcmp.lt.s32.totalorder %v389, 1
  %v391 = vsel %vm390, %v357, %v373
  %v392 = vsel %vm390, %v359, %v375
  %v393 = vsel %vm390, %v361, %v377
  %v394 = vsel %vm390, %v363, %v379
  %v395 = vsel %vm390, %v365, %v381
  %v396 = vsel %vm390, %v367, %v383
  %v397 = vsel %vm390, %v369, %v385
  %v398 = vsel %vm390, %v371, %v387
  %v399 = vsel %vm390, %v373, %v357
  %v400 = vsel %vm390, %v375, %v359
  %v401 = vsel %vm390, %v377, %v361
  %v402 = vsel %vm390, %v379, %v363
  %v403 = vsel %vm390, %v381, %v365
  %v404 = vsel %vm390, %v383, %v367
  %v405 = vsel %vm390, %v385, %v369
  %v406 = vsel %vm390, %v387, %v371
  %v408 = vperm.slane %v347, 0
  %v409 = vperm.slane %v347, 4
  %v412 = vperm.slane %v408, 0
  %v413 = vperm.slane %v409, 0
  %v414 = vmul.f32 %v399, %v412
  %v415 = vmul.f32 %v391, %v413
  %v416 = vmul.f32 %v400, %v412
  %v417 = vmul.f32 %v392, %v413
  %v418 = vmul.f32 %v401, %v412
  %v419 = vmul.f32 %v393, %v413
  %v420 = vmul.f32 %v402, %v412
  %v421 = vmul.f32 %v394, %v413
  %v422 = vmul.f32 %v403, %v412
  %v423 = vmul.f32 %v395, %v413
  %v424 = vmul.f32 %v404, %v412
  %v425 = vmul.f32 %v396, %v413
  %v426 = vmul.f32 %v405, %v412
  %v427 = vmul.f32 %v397, %v413
  %v428 = vmul.f32 %v406, %v412
  %v429 = vmul.f32 %v398, %v413
  %430 = vrot.lane.b32.xlu0 %v42, 127
  %v431 = vpop.permute.xlu0 %430
  %432 = vrot.lane.b32.xlu0 %v44, 127
  %v433 = vpop.permute.xlu0 %432
  %434 = vrot.lane.b32.xlu0 %v46, 127
  %v435 = vpop.permute.xlu0 %434
  %436 = vrot.lane.b32.xlu0 %v48, 127
  %v437 = vpop.permute.xlu0 %436
  %438 = vrot.lane.b32.xlu0 %v50, 127
  %v439 = vpop.permute.xlu0 %438
  %440 = vrot.lane.b32.xlu0 %v52, 127
  %v441 = vpop.permute.xlu0 %440
  %442 = vrot.lane.b32.xlu0 %v54, 127
  %v443 = vpop.permute.xlu0 %442
  %444 = vrot.lane.b32.xlu0 %v56, 127
  %v445 = vpop.permute.xlu0 %444
  %446 = vrot.lane.b32.xlu0 %v43, 127
  %v447 = vpop.permute.xlu0 %446
  %448 = vrot.lane.b32.xlu0 %v45, 127
  %v449 = vpop.permute.xlu0 %448
  %450 = vrot.lane.b32.xlu0 %v47, 127
  %v451 = vpop.permute.xlu0 %450
  %452 = vrot.lane.b32.xlu0 %v49, 127
  %v453 = vpop.permute.xlu0 %452
  %454 = vrot.lane.b32.xlu0 %v51, 127
  %v455 = vpop.permute.xlu0 %454
  %456 = vrot.lane.b32.xlu0 %v53, 127
  %v457 = vpop.permute.xlu0 %456
  %458 = vrot.lane.b32.xlu0 %v55, 127
  %v459 = vpop.permute.xlu0 %458
  %460 = vrot.lane.b32.xlu0 %v57, 127
  %v461 = vpop.permute.xlu0 %460
  %vm462 = vcmp.lt.s32.totalorder %v389, 127
  %v463 = vsel %vm462, %v431, %v447
  %v464 = vsel %vm462, %v433, %v449
  %v465 = vsel %vm462, %v435, %v451
  %v466 = vsel %vm462, %v437, %v453
  %v467 = vsel %vm462, %v439, %v455
  %v468 = vsel %vm462, %v441, %v457
  %v469 = vsel %vm462, %v443, %v459
  %v470 = vsel %vm462, %v445, %v461
  %v471 = vsel %vm462, %v447, %v431
  %v472 = vsel %vm462, %v449, %v433
  %v473 = vsel %vm462, %v451, %v435
  %v474 = vsel %vm462, %v453, %v437
  %v475 = vsel %vm462, %v455, %v439
  %v476 = vsel %vm462, %v457, %v441
  %v477 = vsel %vm462, %v459, %v443
  %v478 = vsel %vm462, %v461, %v445
  %v479 = vperm.slane %v347, 1
  %v480 = vperm.slane %v347, 5
  %v483 = vperm.slane %v479, 1
  %v484 = vperm.slane %v480, 1
  %v485 = vmul.f32 %v463, %v483
  %v486 = vmul.f32 %v471, %v484
  %v487 = vmul.f32 %v464, %v483
  %v488 = vmul.f32 %v472, %v484
  %v489 = vmul.f32 %v465, %v483
  %v490 = vmul.f32 %v473, %v484
  %v491 = vmul.f32 %v466, %v483
  %v492 = vmul.f32 %v474, %v484
  %v493 = vmul.f32 %v467, %v483
  %v494 = vmul.f32 %v475, %v484
  %v495 = vmul.f32 %v468, %v483
  %v496 = vmul.f32 %v476, %v484
  %v497 = vmul.f32 %v469, %v483
  %v498 = vmul.f32 %v477, %v484
  %v499 = vmul.f32 %v470, %v483
  %v500 = vmul.f32 %v478, %v484
  %502 = vset.pattern.permute.xlu0 0
  %503 = vperm.xlu0 %502, %v348
  %v504 = vpop.permute.xlu0 %503
  %507 = vset.pattern.permute.xlu0 0
  %508 = vperm.xlu0 %507, %v349
  %v509 = vpop.permute.xlu0 %508
  %512 = vset.pattern.permute.xlu0 0
  %513 = vperm.xlu0 %512, %v350
  %v514 = vpop.permute.xlu0 %513
  %517 = vset.pattern.permute.xlu0 0
  %518 = vperm.xlu0 %517, %v351
  %v519 = vpop.permute.xlu0 %518
  %522 = vset.pattern.permute.xlu0 0
  %523 = vperm.xlu0 %522, %v352
  %v524 = vpop.permute.xlu0 %523
  %527 = vset.pattern.permute.xlu0 0
  %528 = vperm.xlu0 %527, %v353
  %v529 = vpop.permute.xlu0 %528
  %532 = vset.pattern.permute.xlu0 0
  %533 = vperm.xlu0 %532, %v354
  %v534 = vpop.permute.xlu0 %533
  %537 = vset.pattern.permute.xlu0 0
  %538 = vperm.xlu0 %537, %v355
  %v539 = vpop.permute.xlu0 %538
  %v541 = vmul.f32 %v414, %v504
  %v542 = vmul.f32 %v415, %v504
  %v543 = vmul.f32 %v416, %v509
  %v544 = vmul.f32 %v417, %v509
  %v545 = vmul.f32 %v418, %v514
  %v546 = vmul.f32 %v419, %v514
  %v547 = vmul.f32 %v420, %v519
  %v548 = vmul.f32 %v421, %v519
  %v549 = vmul.f32 %v422, %v524
  %v550 = vmul.f32 %v423, %v524
  %v551 = vmul.f32 %v424, %v529
  %v552 = vmul.f32 %v425, %v529
  %v553 = vmul.f32 %v426, %v534
  %v554 = vmul.f32 %v427, %v534
  %v555 = vmul.f32 %v428, %v539
  %v556 = vmul.f32 %v429, %v539
  %557 = vset.pattern.permute.xlu0 1
  %558 = vperm.xlu0 %557, %v348
  %v559 = vpop.permute.xlu0 %558
  %561 = vset.pattern.permute.xlu0 1
  %562 = vperm.xlu0 %561, %v349
  %v563 = vpop.permute.xlu0 %562
  %565 = vset.pattern.permute.xlu0 1
  %566 = vperm.xlu0 %565, %v350
  %v567 = vpop.permute.xlu0 %566
  %569 = vset.pattern.permute.xlu0 1
  %570 = vperm.xlu0 %569, %v351
  %v571 = vpop.permute.xlu0 %570
  %573 = vset.pattern.permute.xlu0 1
  %574 = vperm.xlu0 %573, %v352
  %v575 = vpop.permute.xlu0 %574
  %577 = vset.pattern.permute.xlu0 1
  %578 = vperm.xlu0 %577, %v353
  %v579 = vpop.permute.xlu0 %578
  %581 = vset.pattern.permute.xlu0 1
  %582 = vperm.xlu0 %581, %v354
  %v583 = vpop.permute.xlu0 %582
  %585 = vset.pattern.permute.xlu0 1
  %586 = vperm.xlu0 %585, %v355
  %v587 = vpop.permute.xlu0 %586
  %v589 = vmul.f32 %v42, %v559
  %v590 = vmul.f32 %v43, %v559
  %v591 = vmul.f32 %v44, %v563
  %v592 = vmul.f32 %v45, %v563
  %v593 = vmul.f32 %v46, %v567
  %v594 = vmul.f32 %v47, %v567
  %v595 = vmul.f32 %v48, %v571
  %v596 = vmul.f32 %v49, %v571
  %v597 = vmul.f32 %v50, %v575
  %v598 = vmul.f32 %v51, %v575
  %v599 = vmul.f32 %v52, %v579
  %v600 = vmul.f32 %v53, %v579
  %v601 = vmul.f32 %v54, %v583
  %v602 = vmul.f32 %v55, %v583
  %v603 = vmul.f32 %v56, %v587
  %v604 = vmul.f32 %v57, %v587
  %v605 = vadd.f32 %v541, %v589
  %v606 = vadd.f32 %v542, %v590
  %v607 = vadd.f32 %v543, %v591
  %v608 = vadd.f32 %v544, %v592
  %v609 = vadd.f32 %v545, %v593
  %v610 = vadd.f32 %v546, %v594
  %v611 = vadd.f32 %v547, %v595
  %v612 = vadd.f32 %v548, %v596
  %v613 = vadd.f32 %v549, %v597
  %v614 = vadd.f32 %v550, %v598
  %v615 = vadd.f32 %v551, %v599
  %v616 = vadd.f32 %v552, %v600
  %v617 = vadd.f32 %v553, %v601
  %v618 = vadd.f32 %v554, %v602
  %v619 = vadd.f32 %v555, %v603
  %v620 = vadd.f32 %v556, %v604
  %621 = vset.pattern.permute.xlu0 2
  %622 = vperm.xlu0 %621, %v348
  %v623 = vpop.permute.xlu0 %622
  %625 = vset.pattern.permute.xlu0 2
  %626 = vperm.xlu0 %625, %v349
  %v627 = vpop.permute.xlu0 %626
  %629 = vset.pattern.permute.xlu0 2
  %630 = vperm.xlu0 %629, %v350
  %v631 = vpop.permute.xlu0 %630
  %633 = vset.pattern.permute.xlu0 2
  %634 = vperm.xlu0 %633, %v351
  %v635 = vpop.permute.xlu0 %634
  %637 = vset.pattern.permute.xlu0 2
  %638 = vperm.xlu0 %637, %v352
  %v639 = vpop.permute.xlu0 %638
  %641 = vset.pattern.permute.xlu0 2
  %642 = vperm.xlu0 %641, %v353
  %v643 = vpop.permute.xlu0 %642
  %645 = vset.pattern.permute.xlu0 2
  %646 = vperm.xlu0 %645, %v354
  %v647 = vpop.permute.xlu0 %646
  %649 = vset.pattern.permute.xlu0 2
  %650 = vperm.xlu0 %649, %v355
  %v651 = vpop.permute.xlu0 %650
  %v653 = vmul.f32 %v485, %v623
  %v654 = vmul.f32 %v486, %v623
  %v655 = vmul.f32 %v487, %v627
  %v656 = vmul.f32 %v488, %v627
  %v657 = vmul.f32 %v489, %v631
  %v658 = vmul.f32 %v490, %v631
  %v659 = vmul.f32 %v491, %v635
  %v660 = vmul.f32 %v492, %v635
  %v661 = vmul.f32 %v493, %v639
  %v662 = vmul.f32 %v494, %v639
  %v663 = vmul.f32 %v495, %v643
  %v664 = vmul.f32 %v496, %v643
  %v665 = vmul.f32 %v497, %v647
  %v666 = vmul.f32 %v498, %v647
  %v667 = vmul.f32 %v499, %v651
  %v668 = vmul.f32 %v500, %v651
  %v669 = vadd.f32 %v605, %v653
  %v670 = vadd.f32 %v606, %v654
  %v671 = vadd.f32 %v607, %v655
  %v672 = vadd.f32 %v608, %v656
  %v673 = vadd.f32 %v609, %v657
  %v674 = vadd.f32 %v610, %v658
  %v675 = vadd.f32 %v611, %v659
  %v676 = vadd.f32 %v612, %v660
  %v677 = vadd.f32 %v613, %v661
  %v678 = vadd.f32 %v614, %v662
  %v679 = vadd.f32 %v615, %v663
  %v680 = vadd.f32 %v616, %v664
  %v681 = vadd.f32 %v617, %v665
  %v682 = vadd.f32 %v618, %v666
  %v683 = vadd.f32 %v619, %v667
  %v684 = vadd.f32 %v620, %v668
  %685 = vset.pattern.permute.xlu0 3
  %686 = vperm.xlu0 %685, %v348
  %v687 = vpop.permute.xlu0 %686
  %689 = vset.pattern.permute.xlu0 3
  %690 = vperm.xlu0 %689, %v349
  %v691 = vpop.permute.xlu0 %690
  %693 = vset.pattern.permute.xlu0 3
  %694 = vperm.xlu0 %693, %v350
  %v695 = vpop.permute.xlu0 %694
  %697 = vset.pattern.permute.xlu0 3
  %698 = vperm.xlu0 %697, %v351
  %v699 = vpop.permute.xlu0 %698
  %701 = vset.pattern.permute.xlu0 3
  %702 = vperm.xlu0 %701, %v352
  %v703 = vpop.permute.xlu0 %702
  %705 = vset.pattern.permute.xlu0 3
  %706 = vperm.xlu0 %705, %v353
  %v707 = vpop.permute.xlu0 %706
  %709 = vset.pattern.permute.xlu0 3
  %710 = vperm.xlu0 %709, %v354
  %v711 = vpop.permute.xlu0 %710
  %713 = vset.pattern.permute.xlu0 3
  %714 = vperm.xlu0 %713, %v355
  %v715 = vpop.permute.xlu0 %714
  %v717 = vmul.f32 %v414, %v687
  %v718 = vmul.f32 %v415, %v687
  %v719 = vmul.f32 %v416, %v691
  %v720 = vmul.f32 %v417, %v691
  %v721 = vmul.f32 %v418, %v695
  %v722 = vmul.f32 %v419, %v695
  %v723 = vmul.f32 %v420, %v699
  %v724 = vmul.f32 %v421, %v699
  %v725 = vmul.f32 %v422, %v703
  %v726 = vmul.f32 %v423, %v703
  %v727 = vmul.f32 %v424, %v707
  %v728 = vmul.f32 %v425, %v707
  %v729 = vmul.f32 %v426, %v711
  %v730 = vmul.f32 %v427, %v711
  %v731 = vmul.f32 %v428, %v715
  %v732 = vmul.f32 %v429, %v715
  %733 = vset.pattern.permute.xlu0 4
  %734 = vperm.xlu0 %733, %v348
  %v735 = vpop.permute.xlu0 %734
  %737 = vset.pattern.permute.xlu0 4
  %738 = vperm.xlu0 %737, %v349
  %v739 = vpop.permute.xlu0 %738
  %741 = vset.pattern.permute.xlu0 4
  %742 = vperm.xlu0 %741, %v350
  %v743 = vpop.permute.xlu0 %742
  %745 = vset.pattern.permute.xlu0 4
  %746 = vperm.xlu0 %745, %v351
  %v747 = vpop.permute.xlu0 %746
  %749 = vset.pattern.permute.xlu0 4
  %750 = vperm.xlu0 %749, %v352
  %v751 = vpop.permute.xlu0 %750
  %753 = vset.pattern.permute.xlu0 4
  %754 = vperm.xlu0 %753, %v353
  %v755 = vpop.permute.xlu0 %754
  %757 = vset.pattern.permute.xlu0 4
  %758 = vperm.xlu0 %757, %v354
  %v759 = vpop.permute.xlu0 %758
  %761 = vset.pattern.permute.xlu0 4
  %762 = vperm.xlu0 %761, %v355
  %v763 = vpop.permute.xlu0 %762
  %v765 = vmul.f32 %v42, %v735
  %v766 = vmul.f32 %v43, %v735
  %v767 = vmul.f32 %v44, %v739
  %v768 = vmul.f32 %v45, %v739
  %v769 = vmul.f32 %v46, %v743
  %v770 = vmul.f32 %v47, %v743
  %v771 = vmul.f32 %v48, %v747
  %v772 = vmul.f32 %v49, %v747
  %v773 = vmul.f32 %v50, %v751
  %v774 = vmul.f32 %v51, %v751
  %v775 = vmul.f32 %v52, %v755
  %v776 = vmul.f32 %v53, %v755
  %v777 = vmul.f32 %v54, %v759
  %v778 = vmul.f32 %v55, %v759
  %v779 = vmul.f32 %v56, %v763
  %v780 = vmul.f32 %v57, %v763
  %v781 = vadd.f32 %v717, %v765
  %v782 = vadd.f32 %v718, %v766
  %v783 = vadd.f32 %v719, %v767
  %v784 = vadd.f32 %v720, %v768
  %v785 = vadd.f32 %v721, %v769
  %v786 = vadd.f32 %v722, %v770
  %v787 = vadd.f32 %v723, %v771
  %v788 = vadd.f32 %v724, %v772
  %v789 = vadd.f32 %v725, %v773
  %v790 = vadd.f32 %v726, %v774
  %v791 = vadd.f32 %v727, %v775
  %v792 = vadd.f32 %v728, %v776
  %v793 = vadd.f32 %v729, %v777
  %v794 = vadd.f32 %v730, %v778
  %v795 = vadd.f32 %v731, %v779
  %v796 = vadd.f32 %v732, %v780
  %797 = vset.pattern.permute.xlu0 5
  %798 = vperm.xlu0 %797, %v348
  %v799 = vpop.permute.xlu0 %798
  %801 = vset.pattern.permute.xlu0 5
  %802 = vperm.xlu0 %801, %v349
  %v803 = vpop.permute.xlu0 %802
  %805 = vset.pattern.permute.xlu0 5
  %806 = vperm.xlu0 %805, %v350
  %v807 = vpop.permute.xlu0 %806
  %809 = vset.pattern.permute.xlu0 5
  %810 = vperm.xlu0 %809, %v351
  %v811 = vpop.permute.xlu0 %810
  %813 = vset.pattern.permute.xlu0 5
  %814 = vperm.xlu0 %813, %v352
  %v815 = vpop.permute.xlu0 %814
  %817 = vset.pattern.permute.xlu0 5
  %818 = vperm.xlu0 %817, %v353
  %v819 = vpop.permute.xlu0 %818
  %821 = vset.pattern.permute.xlu0 5
  %822 = vperm.xlu0 %821, %v354
  %v823 = vpop.permute.xlu0 %822
  %825 = vset.pattern.permute.xlu0 5
  %826 = vperm.xlu0 %825, %v355
  %v827 = vpop.permute.xlu0 %826
  %v829 = vmul.f32 %v485, %v799
  %v830 = vmul.f32 %v486, %v799
  %v831 = vmul.f32 %v487, %v803
  %v832 = vmul.f32 %v488, %v803
  %v833 = vmul.f32 %v489, %v807
  %v834 = vmul.f32 %v490, %v807
  %v835 = vmul.f32 %v491, %v811
  %v836 = vmul.f32 %v492, %v811
  %v837 = vmul.f32 %v493, %v815
  %v838 = vmul.f32 %v494, %v815
  %v839 = vmul.f32 %v495, %v819
  %v840 = vmul.f32 %v496, %v819
  %v841 = vmul.f32 %v497, %v823
  %v842 = vmul.f32 %v498, %v823
  %v843 = vmul.f32 %v499, %v827
  %v844 = vmul.f32 %v500, %v827
  %v845 = vadd.f32 %v781, %v829
  %v846 = vadd.f32 %v782, %v830
  %v847 = vadd.f32 %v783, %v831
  %v848 = vadd.f32 %v784, %v832
  %v849 = vadd.f32 %v785, %v833
  %v850 = vadd.f32 %v786, %v834
  %v851 = vadd.f32 %v787, %v835
  %v852 = vadd.f32 %v788, %v836
  %v853 = vadd.f32 %v789, %v837
  %v854 = vadd.f32 %v790, %v838
  %v855 = vadd.f32 %v791, %v839
  %v856 = vadd.f32 %v792, %v840
  %v857 = vadd.f32 %v793, %v841
  %v858 = vadd.f32 %v794, %v842
  %v859 = vadd.f32 %v795, %v843
  %v860 = vadd.f32 %v796, %v844
  %861 = vset.pattern.permute.xlu0 6
  %862 = vperm.xlu0 %861, %v348
  %v863 = vpop.permute.xlu0 %862
  %865 = vset.pattern.permute.xlu0 6
  %866 = vperm.xlu0 %865, %v349
  %v867 = vpop.permute.xlu0 %866
  %869 = vset.pattern.permute.xlu0 6
  %870 = vperm.xlu0 %869, %v350
  %v871 = vpop.permute.xlu0 %870
  %873 = vset.pattern.permute.xlu0 6
  %874 = vperm.xlu0 %873, %v351
  %v875 = vpop.permute.xlu0 %874
  %877 = vset.pattern.permute.xlu0 6
  %878 = vperm.xlu0 %877, %v352
  %v879 = vpop.permute.xlu0 %878
  %881 = vset.pattern.permute.xlu0 6
  %882 = vperm.xlu0 %881, %v353
  %v883 = vpop.permute.xlu0 %882
  %885 = vset.pattern.permute.xlu0 6
  %886 = vperm.xlu0 %885, %v354
  %v887 = vpop.permute.xlu0 %886
  %889 = vset.pattern.permute.xlu0 6
  %890 = vperm.xlu0 %889, %v355
  %v891 = vpop.permute.xlu0 %890
  %v893 = vmul.f32 %v414, %v863
  %v894 = vmul.f32 %v415, %v863
  %v895 = vmul.f32 %v416, %v867
  %v896 = vmul.f32 %v417, %v867
  %v897 = vmul.f32 %v418, %v871
  %v898 = vmul.f32 %v419, %v871
  %v899 = vmul.f32 %v420, %v875
  %v900 = vmul.f32 %v421, %v875
  %v901 = vmul.f32 %v422, %v879
  %v902 = vmul.f32 %v423, %v879
  %v903 = vmul.f32 %v424, %v883
  %v904 = vmul.f32 %v425, %v883
  %v905 = vmul.f32 %v426, %v887
  %v906 = vmul.f32 %v427, %v887
  %v907 = vmul.f32 %v428, %v891
  %v908 = vmul.f32 %v429, %v891
  %909 = vset.pattern.permute.xlu0 7
  %910 = vperm.xlu0 %909, %v348
  %v911 = vpop.permute.xlu0 %910
  %913 = vset.pattern.permute.xlu0 7
  %914 = vperm.xlu0 %913, %v349
  %v915 = vpop.permute.xlu0 %914
  %917 = vset.pattern.permute.xlu0 7
  %918 = vperm.xlu0 %917, %v350
  %v919 = vpop.permute.xlu0 %918
  %921 = vset.pattern.permute.xlu0 7
  %922 = vperm.xlu0 %921, %v351
  %v923 = vpop.permute.xlu0 %922
  %925 = vset.pattern.permute.xlu0 7
  %926 = vperm.xlu0 %925, %v352
  %v927 = vpop.permute.xlu0 %926
  %929 = vset.pattern.permute.xlu0 7
  %930 = vperm.xlu0 %929, %v353
  %v931 = vpop.permute.xlu0 %930
  %933 = vset.pattern.permute.xlu0 7
  %934 = vperm.xlu0 %933, %v354
  %v935 = vpop.permute.xlu0 %934
  %937 = vset.pattern.permute.xlu0 7
  %938 = vperm.xlu0 %937, %v355
  %v939 = vpop.permute.xlu0 %938
  %v941 = vmul.f32 %v42, %v911
  %v942 = vmul.f32 %v43, %v911
  %v943 = vmul.f32 %v44, %v915
  %v944 = vmul.f32 %v45, %v915
  %v945 = vmul.f32 %v46, %v919
  %v946 = vmul.f32 %v47, %v919
  %v947 = vmul.f32 %v48, %v923
  %v948 = vmul.f32 %v49, %v923
  %v949 = vmul.f32 %v50, %v927
  %v950 = vmul.f32 %v51, %v927
  %v951 = vmul.f32 %v52, %v931
  %v952 = vmul.f32 %v53, %v931
  %v953 = vmul.f32 %v54, %v935
  %v954 = vmul.f32 %v55, %v935
  %v955 = vmul.f32 %v56, %v939
  %v956 = vmul.f32 %v57, %v939
  %v957 = vadd.f32 %v893, %v941
  %v958 = vadd.f32 %v894, %v942
  %v959 = vadd.f32 %v895, %v943
  %v960 = vadd.f32 %v896, %v944
  %v961 = vadd.f32 %v897, %v945
  %v962 = vadd.f32 %v898, %v946
  %v963 = vadd.f32 %v899, %v947
  %v964 = vadd.f32 %v900, %v948
  %v965 = vadd.f32 %v901, %v949
  %v966 = vadd.f32 %v902, %v950
  %v967 = vadd.f32 %v903, %v951
  %v968 = vadd.f32 %v904, %v952
  %v969 = vadd.f32 %v905, %v953
  %v970 = vadd.f32 %v906, %v954
  %v971 = vadd.f32 %v907, %v955
  %v972 = vadd.f32 %v908, %v956
  %973 = vset.pattern.permute.xlu0 8
  %974 = vperm.xlu0 %973, %v348
  %v975 = vpop.permute.xlu0 %974
  %977 = vset.pattern.permute.xlu0 8
  %978 = vperm.xlu0 %977, %v349
  %v979 = vpop.permute.xlu0 %978
  %981 = vset.pattern.permute.xlu0 8
  %982 = vperm.xlu0 %981, %v350
  %v983 = vpop.permute.xlu0 %982
  %985 = vset.pattern.permute.xlu0 8
  %986 = vperm.xlu0 %985, %v351
  %v987 = vpop.permute.xlu0 %986
  %989 = vset.pattern.permute.xlu0 8
  %990 = vperm.xlu0 %989, %v352
  %v991 = vpop.permute.xlu0 %990
  %993 = vset.pattern.permute.xlu0 8
  %994 = vperm.xlu0 %993, %v353
  %v995 = vpop.permute.xlu0 %994
  %997 = vset.pattern.permute.xlu0 8
  %998 = vperm.xlu0 %997, %v354
  %v999 = vpop.permute.xlu0 %998
  %1001 = vset.pattern.permute.xlu0 8
  %1002 = vperm.xlu0 %1001, %v355
  %v1003 = vpop.permute.xlu0 %1002
  %v1005 = vmul.f32 %v485, %v975
  %v1006 = vmul.f32 %v486, %v975
  %v1007 = vmul.f32 %v487, %v979
  %v1008 = vmul.f32 %v488, %v979
  %v1009 = vmul.f32 %v489, %v983
  %v1010 = vmul.f32 %v490, %v983
  %v1011 = vmul.f32 %v491, %v987
  %v1012 = vmul.f32 %v492, %v987
  %v1013 = vmul.f32 %v493, %v991
  %v1014 = vmul.f32 %v494, %v991
  %v1015 = vmul.f32 %v495, %v995
  %v1016 = vmul.f32 %v496, %v995
  %v1017 = vmul.f32 %v497, %v999
  %v1018 = vmul.f32 %v498, %v999
  %v1019 = vmul.f32 %v499, %v1003
  %v1020 = vmul.f32 %v500, %v1003
  %v1021 = vadd.f32 %v957, %v1005
  %v1022 = vadd.f32 %v958, %v1006
  %v1023 = vadd.f32 %v959, %v1007
  %v1024 = vadd.f32 %v960, %v1008
  %v1025 = vadd.f32 %v961, %v1009
  %v1026 = vadd.f32 %v962, %v1010
  %v1027 = vadd.f32 %v963, %v1011
  %v1028 = vadd.f32 %v964, %v1012
  %v1029 = vadd.f32 %v965, %v1013
  %v1030 = vadd.f32 %v966, %v1014
  %v1031 = vadd.f32 %v967, %v1015
  %v1032 = vadd.f32 %v968, %v1016
  %v1033 = vadd.f32 %v969, %v1017
  %v1034 = vadd.f32 %v970, %v1018
  %v1035 = vadd.f32 %v971, %v1019
  %v1036 = vadd.f32 %v972, %v1020
  %1037 = vrot.lane.b32.xlu0 %v669, 16
  %v1038 = vpop.permute.xlu0 %1037
  %1039 = vrot.lane.b32.xlu0 %v671, 16
  %v1040 = vpop.permute.xlu0 %1039
  %1041 = vrot.lane.b32.xlu0 %v673, 16
  %v1042 = vpop.permute.xlu0 %1041
  %1043 = vrot.lane.b32.xlu0 %v675, 16
  %v1044 = vpop.permute.xlu0 %1043
  %1045 = vrot.lane.b32.xlu0 %v677, 16
  %v1046 = vpop.permute.xlu0 %1045
  %1047 = vrot.lane.b32.xlu0 %v679, 16
  %v1048 = vpop.permute.xlu0 %1047
  %1049 = vrot.lane.b32.xlu0 %v681, 16
  %v1050 = vpop.permute.xlu0 %1049
  %1051 = vrot.lane.b32.xlu0 %v683, 16
  %v1052 = vpop.permute.xlu0 %1051
  %1053 = vrot.lane.b32.xlu0 %v670, 16
  %v1054 = vpop.permute.xlu0 %1053
  %1055 = vrot.lane.b32.xlu0 %v672, 16
  %v1056 = vpop.permute.xlu0 %1055
  %1057 = vrot.lane.b32.xlu0 %v674, 16
  %v1058 = vpop.permute.xlu0 %1057
  %1059 = vrot.lane.b32.xlu0 %v676, 16
  %v1060 = vpop.permute.xlu0 %1059
  %1061 = vrot.lane.b32.xlu0 %v678, 16
  %v1062 = vpop.permute.xlu0 %1061
  %1063 = vrot.lane.b32.xlu0 %v680, 16
  %v1064 = vpop.permute.xlu0 %1063
  %1065 = vrot.lane.b32.xlu0 %v682, 16
  %v1066 = vpop.permute.xlu0 %1065
  %1067 = vrot.lane.b32.xlu0 %v684, 16
  %v1068 = vpop.permute.xlu0 %1067
  %vm1069 = vcmp.lt.s32.totalorder %v389, 16
  %v1070 = vsel %vm1069, %v1038, %v1054
  %v1071 = vsel %vm1069, %v1040, %v1056
  %v1072 = vsel %vm1069, %v1042, %v1058
  %v1073 = vsel %vm1069, %v1044, %v1060
  %v1074 = vsel %vm1069, %v1046, %v1062
  %v1075 = vsel %vm1069, %v1048, %v1064
  %v1076 = vsel %vm1069, %v1050, %v1066
  %v1077 = vsel %vm1069, %v1052, %v1068
  %v1078 = vsel %vm1069, %v1054, %v1038
  %v1079 = vsel %vm1069, %v1056, %v1040
  %v1080 = vsel %vm1069, %v1058, %v1042
  %v1081 = vsel %vm1069, %v1060, %v1044
  %v1082 = vsel %vm1069, %v1062, %v1046
  %v1083 = vsel %vm1069, %v1064, %v1048
  %v1084 = vsel %vm1069, %v1066, %v1050
  %v1085 = vsel %vm1069, %v1068, %v1052
  %v1086 = vperm.slane %v347, 2
  %v1087 = vperm.slane %v347, 6
  %v1090 = vperm.slane %v1086, 2
  %v1091 = vperm.slane %v1087, 2
  %v1092 = vmul.f32 %v1078, %v1090
  %v1093 = vmul.f32 %v1070, %v1091
  %v1094 = vmul.f32 %v1079, %v1090
  %v1095 = vmul.f32 %v1071, %v1091
  %v1096 = vmul.f32 %v1080, %v1090
  %v1097 = vmul.f32 %v1072, %v1091
  %v1098 = vmul.f32 %v1081, %v1090
  %v1099 = vmul.f32 %v1073, %v1091
  %v1100 = vmul.f32 %v1082, %v1090
  %v1101 = vmul.f32 %v1074, %v1091
  %v1102 = vmul.f32 %v1083, %v1090
  %v1103 = vmul.f32 %v1075, %v1091
  %v1104 = vmul.f32 %v1084, %v1090
  %v1105 = vmul.f32 %v1076, %v1091
  %v1106 = vmul.f32 %v1085, %v1090
  %v1107 = vmul.f32 %v1077, %v1091
  %v1108 = vadd.f32 %v845, %v1092
  %v1109 = vadd.f32 %v846, %v1093
  %v1110 = vadd.f32 %v847, %v1094
  %v1111 = vadd.f32 %v848, %v1095
  %v1112 = vadd.f32 %v849, %v1096
  %v1113 = vadd.f32 %v850, %v1097
  %v1114 = vadd.f32 %v851, %v1098
  %v1115 = vadd.f32 %v852, %v1099
  %v1116 = vadd.f32 %v853, %v1100
  %v1117 = vadd.f32 %v854, %v1101
  %v1118 = vadd.f32 %v855, %v1102
  %v1119 = vadd.f32 %v856, %v1103
  %v1120 = vadd.f32 %v857, %v1104
  %v1121 = vadd.f32 %v858, %v1105
  %v1122 = vadd.f32 %v859, %v1106
  %v1123 = vadd.f32 %v860, %v1107
  %1124 = vrot.lane.b32.xlu0 %v1021, 112
  %v1125 = vpop.permute.xlu0 %1124
  %1126 = vrot.lane.b32.xlu0 %v1023, 112
  %v1127 = vpop.permute.xlu0 %1126
  %1128 = vrot.lane.b32.xlu0 %v1025, 112
  %v1129 = vpop.permute.xlu0 %1128
  %1130 = vrot.lane.b32.xlu0 %v1027, 112
  %v1131 = vpop.permute.xlu0 %1130
  %1132 = vrot.lane.b32.xlu0 %v1029, 112
  %v1133 = vpop.permute.xlu0 %1132
  %1134 = vrot.lane.b32.xlu0 %v1031, 112
  %v1135 = vpop.permute.xlu0 %1134
  %1136 = vrot.lane.b32.xlu0 %v1033, 112
  %v1137 = vpop.permute.xlu0 %1136
  %1138 = vrot.lane.b32.xlu0 %v1035, 112
  %v1139 = vpop.permute.xlu0 %1138
  %1140 = vrot.lane.b32.xlu0 %v1022, 112
  %v1141 = vpop.permute.xlu0 %1140
  %1142 = vrot.lane.b32.xlu0 %v1024, 112
  %v1143 = vpop.permute.xlu0 %1142
  %1144 = vrot.lane.b32.xlu0 %v1026, 112
  %v1145 = vpop.permute.xlu0 %1144
  %1146 = vrot.lane.b32.xlu0 %v1028, 112
  %v1147 = vpop.permute.xlu0 %1146
  %1148 = vrot.lane.b32.xlu0 %v1030, 112
  %v1149 = vpop.permute.xlu0 %1148
  %1150 = vrot.lane.b32.xlu0 %v1032, 112
  %v1151 = vpop.permute.xlu0 %1150
  %1152 = vrot.lane.b32.xlu0 %v1034, 112
  %v1153 = vpop.permute.xlu0 %1152
  %1154 = vrot.lane.b32.xlu0 %v1036, 112
  %v1155 = vpop.permute.xlu0 %1154
  %vm1156 = vcmp.lt.s32.totalorder %v389, 112
  %v1157 = vsel %vm1156, %v1125, %v1141
  %v1158 = vsel %vm1156, %v1127, %v1143
  %v1159 = vsel %vm1156, %v1129, %v1145
  %v1160 = vsel %vm1156, %v1131, %v1147
  %v1161 = vsel %vm1156, %v1133, %v1149
  %v1162 = vsel %vm1156, %v1135, %v1151
  %v1163 = vsel %vm1156, %v1137, %v1153
  %v1164 = vsel %vm1156, %v1139, %v1155
  %v1165 = vsel %vm1156, %v1141, %v1125
  %v1166 = vsel %vm1156, %v1143, %v1127
  %v1167 = vsel %vm1156, %v1145, %v1129
  %v1168 = vsel %vm1156, %v1147, %v1131
  %v1169 = vsel %vm1156, %v1149, %v1133
  %v1170 = vsel %vm1156, %v1151, %v1135
  %v1171 = vsel %vm1156, %v1153, %v1137
  %v1172 = vsel %vm1156, %v1155, %v1139
  %v1173 = vperm.slane %v347, 3
  %v1174 = vperm.slane %v347, 7
  %v1177 = vperm.slane %v1173, 3
  %v1178 = vperm.slane %v1174, 3
  %v1179 = vmul.f32 %v1157, %v1177
  %v1180 = vmul.f32 %v1165, %v1178
  %v1181 = vmul.f32 %v1158, %v1177
  %v1182 = vmul.f32 %v1166, %v1178
  %v1183 = vmul.f32 %v1159, %v1177
  %v1184 = vmul.f32 %v1167, %v1178
  %v1185 = vmul.f32 %v1160, %v1177
  %v1186 = vmul.f32 %v1168, %v1178
  %v1187 = vmul.f32 %v1161, %v1177
  %v1188 = vmul.f32 %v1169, %v1178
  %v1189 = vmul.f32 %v1162, %v1177
  %v1190 = vmul.f32 %v1170, %v1178
  %v1191 = vmul.f32 %v1163, %v1177
  %v1192 = vmul.f32 %v1171, %v1178
  %v1193 = vmul.f32 %v1164, %v1177
  %v1194 = vmul.f32 %v1172, %v1178
  %v1195 = vadd.f32 %v1108, %v1179
  %v1196 = vadd.f32 %v1109, %v1180
  %v1197 = vadd.f32 %v1110, %v1181
  %v1198 = vadd.f32 %v1111, %v1182
  %v1199 = vadd.f32 %v1112, %v1183
  %v1200 = vadd.f32 %v1113, %v1184
  %v1201 = vadd.f32 %v1114, %v1185
  %v1202 = vadd.f32 %v1115, %v1186
  %v1203 = vadd.f32 %v1116, %v1187
  %v1204 = vadd.f32 %v1117, %v1188
  %v1205 = vadd.f32 %v1118, %v1189
  %v1206 = vadd.f32 %v1119, %v1190
  %v1207 = vadd.f32 %v1120, %v1191
  %v1208 = vadd.f32 %v1121, %v1192
  %v1209 = vadd.f32 %v1122, %v1193
  %v1210 = vadd.f32 %v1123, %v1194
  %v1211 = vld [vmem:[%s3] sm:$0xf]
  %v1212 = vld [vmem:[%s3 + $0x4] sm:$0xf]
  %v1213 = vld [vmem:[%s3 + $0x8] sm:$0xf]
  %v1214 = vld [vmem:[%s3 + $0xc] sm:$0xf]
  %v1215 = vld [vmem:[%s3 + $0x10] sm:$0xf]
  %v1216 = vld [vmem:[%s3 + $0x14] sm:$0xf]
  %v1217 = vld [vmem:[%s3 + $0x18] sm:$0xf]
  %v1218 = vld [vmem:[%s3 + $0x1c] sm:$0xf]
  %v1219 = vpack.c.bf16 %v1197, %v1195
  %v1220 = vpack.c.bf16 %v1198, %v1196
  %v1221 = vpack.c.bf16 %v1201, %v1199
  %v1222 = vpack.c.bf16 %v1202, %v1200
  %v1223 = vpack.c.bf16 %v1205, %v1203
  %v1224 = vpack.c.bf16 %v1206, %v1204
  %v1225 = vpack.c.bf16 %v1209, %v1207
  %v1226 = vpack.c.bf16 %v1210, %v1208
  %v1235 = vunpack.c.l.b16 %v1211
  %v1236 = vunpack.c.l.b16 %v1212
  %v1237 = vunpack.c.l.b16 %v1213
  %v1238 = vunpack.c.l.b16 %v1214
  %v1239 = vunpack.c.l.b16 %v1215
  %v1240 = vunpack.c.l.b16 %v1216
  %v1241 = vunpack.c.l.b16 %v1217
  %v1242 = vunpack.c.l.b16 %v1218
  %v1243 = vpack.c.b16 %v1236, %v1235
  %v1244 = vpack.c.b16 %v1238, %v1237
  %v1245 = vpack.c.b16 %v1240, %v1239
  %v1246 = vpack.c.b16 %v1242, %v1241
  %vm1247 = vcmask 523264
  %v1249 = vsel %vm1247, %v1243, 0
  %v1252 = vsel %vm1247, %v1244, 0
  %v1255 = vsel %vm1247, %v1245, 0
  %v1258 = vsel %vm1247, %v1246, 0
  %1260 = vmatpush.bf16.msra.mxu0 0
  %1261 = vmatpush.bf16.msra.mxu0 0
  %1262 = vmatpush.bf16.msra.mxu0 0
  %1263 = vmatpush.bf16.msra.mxu0 0
  %1264 = vmatpush.bf16.msra.mxu0 %v1225
  %1265 = vmatpush.bf16.msra.mxu0 %v1223
  %1266 = vmatpush.bf16.msra.mxu0 %v1221
  %1267 = vmatpush.bf16.msra.mxu0 %v1219
  %1268 = vmatmul.bf16.gmra.mxu0 %v1249
  %v1269 = vpop.f32.mrf.mxu0
  %v1270 = vadd.f32 0.0, %v1269
  %v1271 = vpop.f32.mrf.mxu0
  %v1272 = vadd.f32 0.0, %v1271
  %1273 = vmatmul.bf16.gmra.mxu0 %v1252
  %v1274 = vpop.f32.mrf.mxu0
  %v1275 = vadd.f32 0.0, %v1274
  %v1276 = vpop.f32.mrf.mxu0
  %v1277 = vadd.f32 0.0, %v1276
  %1278 = vmatmul.bf16.gmra.mxu0 %v1255
  %v1279 = vpop.f32.mrf.mxu0
  %v1280 = vadd.f32 0.0, %v1279
  %v1281 = vpop.f32.mrf.mxu0
  %v1282 = vadd.f32 0.0, %v1281
  %1283 = vmatmul.bf16.gmra.mxu0 %v1258
  %v1284 = vpop.f32.mrf.mxu0
  %v1285 = vadd.f32 0.0, %v1284
  %v1286 = vpop.f32.mrf.mxu0
  %v1287 = vadd.f32 0.0, %v1286
  %1288 = vdwg.mxu0
  %1289 = vmatpush.bf16.msra.mxu0 0
  %1290 = vmatpush.bf16.msra.mxu0 0
  %1291 = vmatpush.bf16.msra.mxu0 0
  %1292 = vmatpush.bf16.msra.mxu0 0
  %1293 = vmatpush.bf16.msra.mxu0 %v1226
  %1294 = vmatpush.bf16.msra.mxu0 %v1224
  %1295 = vmatpush.bf16.msra.mxu0 %v1222
  %1296 = vmatpush.bf16.msra.mxu0 %v1220
  %1297 = vmatmul.bf16.gmra.mxu0 %v1249
  %v1298 = vpop.f32.mrf.mxu0
  %v1299 = vadd.f32 0.0, %v1298
  %v1300 = vpop.f32.mrf.mxu0
  %v1301 = vadd.f32 0.0, %v1300
  %1302 = vmatmul.bf16.gmra.mxu0 %v1252
  %v1303 = vpop.f32.mrf.mxu0
  %v1304 = vadd.f32 0.0, %v1303
  %v1305 = vpop.f32.mrf.mxu0
  %v1306 = vadd.f32 0.0, %v1305
  %1307 = vmatmul.bf16.gmra.mxu0 %v1255
  %v1308 = vpop.f32.mrf.mxu0
  %v1309 = vadd.f32 0.0, %v1308
  %v1310 = vpop.f32.mrf.mxu0
  %v1311 = vadd.f32 0.0, %v1310
  %1312 = vmatmul.bf16.gmra.mxu0 %v1258
  %v1313 = vpop.f32.mrf.mxu0
  %v1314 = vadd.f32 0.0, %v1313
  %v1315 = vpop.f32.mrf.mxu0
  %v1316 = vadd.f32 0.0, %v1315
  %1317 = vdwg.mxu0
  %v1318 = vadd.f32 %v1270, %v1299
  %1319 = vadd.xlane.f32.xlu0 %v1318
  %v1320 = vpop.xlane.xlu0 %1319
  %v1321 = vadd.f32 %v1272, %v1301
  %1322 = vadd.xlane.f32.xlu0 %v1321
  %v1323 = vpop.xlane.xlu0 %1322
  %v1324 = vadd.f32 %v1275, %v1304
  %1325 = vadd.xlane.f32.xlu0 %v1324
  %v1326 = vpop.xlane.xlu0 %1325
  %v1327 = vadd.f32 %v1277, %v1306
  %1328 = vadd.xlane.f32.xlu0 %v1327
  %v1329 = vpop.xlane.xlu0 %1328
  %v1330 = vadd.f32 %v1280, %v1309
  %1331 = vadd.xlane.f32.xlu0 %v1330
  %v1332 = vpop.xlane.xlu0 %1331
  %v1333 = vadd.f32 %v1282, %v1311
  %1334 = vadd.xlane.f32.xlu0 %v1333
  %v1335 = vpop.xlane.xlu0 %1334
  %v1336 = vadd.f32 %v1285, %v1314
  %1337 = vadd.xlane.f32.xlu0 %v1336
  %v1338 = vpop.xlane.xlu0 %1337
  %v1339 = vadd.f32 %v1287, %v1316
  %1340 = vadd.xlane.f32.xlu0 %v1339
  %v1341 = vpop.xlane.xlu0 %1340
  %v1342 = vmul.f32 %v1270, %v1270
  %v1343 = vmul.f32 %v1299, %v1299
  %v1344 = vmul.f32 %v1272, %v1272
  %v1345 = vmul.f32 %v1301, %v1301
  %v1346 = vmul.f32 %v1275, %v1275
  %v1347 = vmul.f32 %v1304, %v1304
  %v1348 = vmul.f32 %v1277, %v1277
  %v1349 = vmul.f32 %v1306, %v1306
  %v1350 = vmul.f32 %v1280, %v1280
  %v1351 = vmul.f32 %v1309, %v1309
  %v1352 = vmul.f32 %v1282, %v1282
  %v1353 = vmul.f32 %v1311, %v1311
  %v1354 = vmul.f32 %v1285, %v1285
  %v1355 = vmul.f32 %v1314, %v1314
  %v1356 = vmul.f32 %v1287, %v1287
  %v1357 = vmul.f32 %v1316, %v1316
  %v1358 = vadd.f32 %v1342, %v1343
  %1359 = vadd.xlane.f32.xlu0 %v1358
  %v1360 = vpop.xlane.xlu0 %1359
  %v1361 = vadd.f32 %v1344, %v1345
  %1362 = vadd.xlane.f32.xlu0 %v1361
  %v1363 = vpop.xlane.xlu0 %1362
  %v1364 = vadd.f32 %v1346, %v1347
  %1365 = vadd.xlane.f32.xlu0 %v1364
  %v1366 = vpop.xlane.xlu0 %1365
  %v1367 = vadd.f32 %v1348, %v1349
  %1368 = vadd.xlane.f32.xlu0 %v1367
  %v1369 = vpop.xlane.xlu0 %1368
  %v1370 = vadd.f32 %v1350, %v1351
  %1371 = vadd.xlane.f32.xlu0 %v1370
  %v1372 = vpop.xlane.xlu0 %1371
  %v1373 = vadd.f32 %v1352, %v1353
  %1374 = vadd.xlane.f32.xlu0 %v1373
  %v1375 = vpop.xlane.xlu0 %1374
  %v1376 = vadd.f32 %v1354, %v1355
  %1377 = vadd.xlane.f32.xlu0 %v1376
  %v1378 = vpop.xlane.xlu0 %1377
  %v1379 = vadd.f32 %v1356, %v1357
  %1380 = vadd.xlane.f32.xlu0 %v1379
  %v1381 = vpop.xlane.xlu0 %1380
  %vm1382 = vcmask 7168
  %v1383 = vsel %vm1382, %v1320, %v1360
  %v1384 = vsel %vm1382, %v1323, %v1363
  %v1385 = vsel %vm1382, %v1326, %v1366
  %v1386 = vsel %vm1382, %v1329, %v1369
  %v1387 = vsel %vm1382, %v1332, %v1372
  %v1388 = vsel %vm1382, %v1335, %v1375
  %v1389 = vsel %vm1382, %v1338, %v1378
  %v1390 = vsel %vm1382, %v1341, %v1381
  %v1391 = vadd.f32 %v1383, %v1387
  %v1392 = vadd.f32 %v1384, %v1388
  %v1393 = vadd.f32 %v1385, %v1389
  %v1394 = vadd.f32 %v1386, %v1390
  %v1395 = vrcp.pop 512.0
  %v1396 = vmul.f32 512.0, %v1395
  %v1397 = vsub.f32 1.0, %v1396
  %v1398 = vmul.f32 %v1395, %v1397
  %v1399 = vadd.f32 %v1395, %v1398
  %vm1400 = vweird.f32 %v1395
  %v1401 = vsel %vm1400, %v1395, %v1399
  %v1402 = vmul.f32 %v1391, %v1401
  %v1403 = vmul.f32 %v1392, %v1401
  %v1404 = vmul.f32 %v1393, %v1401
  %v1405 = vmul.f32 %v1394, %v1401
  %v1406 = vmul.f32 %v1402, %v1402
  %v1407 = vmul.f32 %v1403, %v1403
  %v1408 = vmul.f32 %v1404, %v1404
  %v1409 = vmul.f32 %v1405, %v1405
  %1414 = vrot.lane.b32.xlu0 %v1406, 1
  %v1415 = vpop.permute.xlu0 %1414
  %1416 = vrot.lane.b32.xlu0 %v1407, 1
  %v1417 = vpop.permute.xlu0 %1416
  %1418 = vrot.lane.b32.xlu0 %v1408, 1
  %v1419 = vpop.permute.xlu0 %1418
  %1420 = vrot.lane.b32.xlu0 %v1409, 1
  %v1421 = vpop.permute.xlu0 %1420
  %v1426 = vsub.f32 %v1402, %v1415
  %v1427 = vsub.f32 %v1403, %v1417
  %v1428 = vsub.f32 %v1404, %v1419
  %v1429 = vsub.f32 %v1405, %v1421
  %v1430 = vld [vmem:[%s4] sm:$0xff]
  %v1431 = vld [vmem:[%s4 + $0x8] sm:$0xff]
  %v1432 = vld [vmem:[%s4 + $0x10] sm:$0xff]
  %v1433 = vld [vmem:[%s4 + $0x18] sm:$0xff]
  %v1434 = vld [vmem:[%s4 + $0x20] sm:$0xff]
  %v1435 = vld [vmem:[%s4 + $0x28] sm:$0xff]
  %v1436 = vld [vmem:[%s4 + $0x30] sm:$0xff]
  %v1437 = vld [vmem:[%s4 + $0x38] sm:$0xff]
  %v1438 = vadd.f32 %v1426, 1e-05
  %v1439 = vadd.f32 %v1427, 1e-05
  %v1440 = vadd.f32 %v1428, 1e-05
  %v1441 = vadd.f32 %v1429, 1e-05
  %v1442 = vrsqrt.pop %v1438
  %v1443 = vmul.f32 %v1442, %v1438
  %v1444 = vmul.f32 %v1443, %v1442
  %v1445 = vmul.f32 0.5, %v1444
  %v1446 = vsub.f32 1.5, %v1445
  %v1447 = vmul.f32 %v1442, %v1446
  %vm1448 = vweird.f32 %v1438
  %vm1449 = vweird.f32 %v1442
  %vm1450 = vmor %vm1448, %vm1449
  %v1451 = vsel %vm1450, %v1442, %v1447
  %v1452 = vrsqrt.pop %v1439
  %v1453 = vmul.f32 %v1452, %v1439
  %v1454 = vmul.f32 %v1453, %v1452
  %v1455 = vmul.f32 0.5, %v1454
  %v1456 = vsub.f32 1.5, %v1455
  %v1457 = vmul.f32 %v1452, %v1456
  %vm1458 = vweird.f32 %v1439
  %vm1459 = vweird.f32 %v1452
  %vm1460 = vmor %vm1458, %vm1459
  %v1461 = vsel %vm1460, %v1452, %v1457
  %v1462 = vrsqrt.pop %v1440
  %v1463 = vmul.f32 %v1462, %v1440
  %v1464 = vmul.f32 %v1463, %v1462
  %v1465 = vmul.f32 0.5, %v1464
  %v1466 = vsub.f32 1.5, %v1465
  %v1467 = vmul.f32 %v1462, %v1466
  %vm1468 = vweird.f32 %v1440
  %vm1469 = vweird.f32 %v1462
  %vm1470 = vmor %vm1468, %vm1469
  %v1471 = vsel %vm1470, %v1462, %v1467
  %v1472 = vrsqrt.pop %v1441
  %v1473 = vmul.f32 %v1472, %v1441
  %v1474 = vmul.f32 %v1473, %v1472
  %v1475 = vmul.f32 0.5, %v1474
  %v1476 = vsub.f32 1.5, %v1475
  %v1477 = vmul.f32 %v1472, %v1476
  %vm1478 = vweird.f32 %v1441
  %vm1479 = vweird.f32 %v1472
  %vm1480 = vmor %vm1478, %vm1479
  %v1481 = vsel %vm1480, %v1472, %v1477
  %1486 = vrot.lane.b32.xlu0 %v1451, 127
  %v1487 = vpop.permute.xlu0 %1486
  %1488 = vrot.lane.b32.xlu0 %v1461, 127
  %v1489 = vpop.permute.xlu0 %1488
  %1490 = vrot.lane.b32.xlu0 %v1471, 127
  %v1491 = vpop.permute.xlu0 %1490
  %1492 = vrot.lane.b32.xlu0 %v1481, 127
  %v1493 = vpop.permute.xlu0 %1492
  %v1498 = vmul.f32 %v1430, %v1487
  %v1499 = vmul.f32 %v1431, %v1489
  %v1500 = vmul.f32 %v1432, %v1491
  %v1501 = vmul.f32 %v1433, %v1493
  %v1502 = vmul.f32 %v1434, %v1487
  %v1503 = vmul.f32 %v1435, %v1489
  %v1504 = vmul.f32 %v1436, %v1491
  %v1505 = vmul.f32 %v1437, %v1493
  %v1506 = vld [vmem:[%s5] sm:$0xff]
  %v1507 = vld [vmem:[%s5 + $0x8] sm:$0xff]
  %v1508 = vld [vmem:[%s5 + $0x10] sm:$0xff]
  %v1509 = vld [vmem:[%s5 + $0x18] sm:$0xff]
  %v1510 = vld [vmem:[%s5 + $0x20] sm:$0xff]
  %v1511 = vld [vmem:[%s5 + $0x28] sm:$0xff]
  %v1512 = vld [vmem:[%s5 + $0x30] sm:$0xff]
  %v1513 = vld [vmem:[%s5 + $0x38] sm:$0xff]
  %v1514 = vmul.f32 %v1402, %v1498
  %v1515 = vmul.f32 %v1403, %v1499
  %v1516 = vmul.f32 %v1404, %v1500
  %v1517 = vmul.f32 %v1405, %v1501
  %v1518 = vmul.f32 %v1402, %v1502
  %v1519 = vmul.f32 %v1403, %v1503
  %v1520 = vmul.f32 %v1404, %v1504
  %v1521 = vmul.f32 %v1405, %v1505
  %v1522 = vsub.f32 %v1506, %v1514
  %v1523 = vsub.f32 %v1507, %v1515
  %v1524 = vsub.f32 %v1508, %v1516
  %v1525 = vsub.f32 %v1509, %v1517
  %v1526 = vsub.f32 %v1510, %v1518
  %v1527 = vsub.f32 %v1511, %v1519
  %v1528 = vsub.f32 %v1512, %v1520
  %v1529 = vsub.f32 %v1513, %v1521
  %1531 = vset.pattern.permute.xlu0 0
  %1532 = vperm.xlu0 %1531, %v1498
  %v1533 = vpop.permute.xlu0 %1532
  %1536 = vset.pattern.permute.xlu0 0
  %1537 = vperm.xlu0 %1536, %v1499
  %v1538 = vpop.permute.xlu0 %1537
  %1541 = vset.pattern.permute.xlu0 0
  %1542 = vperm.xlu0 %1541, %v1500
  %v1543 = vpop.permute.xlu0 %1542
  %1546 = vset.pattern.permute.xlu0 0
  %1547 = vperm.xlu0 %1546, %v1501
  %v1548 = vpop.permute.xlu0 %1547
  %1551 = vset.pattern.permute.xlu0 0
  %1552 = vperm.xlu0 %1551, %v1502
  %v1553 = vpop.permute.xlu0 %1552
  %1556 = vset.pattern.permute.xlu0 0
  %1557 = vperm.xlu0 %1556, %v1503
  %v1558 = vpop.permute.xlu0 %1557
  %1561 = vset.pattern.permute.xlu0 0
  %1562 = vperm.xlu0 %1561, %v1504
  %v1563 = vpop.permute.xlu0 %1562
  %1566 = vset.pattern.permute.xlu0 0
  %1567 = vperm.xlu0 %1566, %v1505
  %v1568 = vpop.permute.xlu0 %1567
  %v1570 = vmul.f32 %v1270, %v1533
  %v1571 = vmul.f32 %v1299, %v1533
  %v1572 = vmul.f32 %v1272, %v1538
  %v1573 = vmul.f32 %v1301, %v1538
  %v1574 = vmul.f32 %v1275, %v1543
  %v1575 = vmul.f32 %v1304, %v1543
  %v1576 = vmul.f32 %v1277, %v1548
  %v1577 = vmul.f32 %v1306, %v1548
  %v1578 = vmul.f32 %v1280, %v1553
  %v1579 = vmul.f32 %v1309, %v1553
  %v1580 = vmul.f32 %v1282, %v1558
  %v1581 = vmul.f32 %v1311, %v1558
  %v1582 = vmul.f32 %v1285, %v1563
  %v1583 = vmul.f32 %v1314, %v1563
  %v1584 = vmul.f32 %v1287, %v1568
  %v1585 = vmul.f32 %v1316, %v1568
  %1587 = vset.pattern.permute.xlu0 0
  %1588 = vperm.xlu0 %1587, %v1522
  %v1589 = vpop.permute.xlu0 %1588
  %1592 = vset.pattern.permute.xlu0 0
  %1593 = vperm.xlu0 %1592, %v1523
  %v1594 = vpop.permute.xlu0 %1593
  %1597 = vset.pattern.permute.xlu0 0
  %1598 = vperm.xlu0 %1597, %v1524
  %v1599 = vpop.permute.xlu0 %1598
  %1602 = vset.pattern.permute.xlu0 0
  %1603 = vperm.xlu0 %1602, %v1525
  %v1604 = vpop.permute.xlu0 %1603
  %1607 = vset.pattern.permute.xlu0 0
  %1608 = vperm.xlu0 %1607, %v1526
  %v1609 = vpop.permute.xlu0 %1608
  %1612 = vset.pattern.permute.xlu0 0
  %1613 = vperm.xlu0 %1612, %v1527
  %v1614 = vpop.permute.xlu0 %1613
  %1617 = vset.pattern.permute.xlu0 0
  %1618 = vperm.xlu0 %1617, %v1528
  %v1619 = vpop.permute.xlu0 %1618
  %1622 = vset.pattern.permute.xlu0 0
  %1623 = vperm.xlu0 %1622, %v1529
  %v1624 = vpop.permute.xlu0 %1623
  %v1626 = vadd.f32 %v1570, %v1589
  %v1627 = vadd.f32 %v1571, %v1589
  %v1628 = vadd.f32 %v1572, %v1594
  %v1629 = vadd.f32 %v1573, %v1594
  %v1630 = vadd.f32 %v1574, %v1599
  %v1631 = vadd.f32 %v1575, %v1599
  %v1632 = vadd.f32 %v1576, %v1604
  %v1633 = vadd.f32 %v1577, %v1604
  %v1634 = vadd.f32 %v1578, %v1609
  %v1635 = vadd.f32 %v1579, %v1609
  %v1636 = vadd.f32 %v1580, %v1614
  %v1637 = vadd.f32 %v1581, %v1614
  %v1638 = vadd.f32 %v1582, %v1619
  %v1639 = vadd.f32 %v1583, %v1619
  %v1640 = vadd.f32 %v1584, %v1624
  %v1641 = vadd.f32 %v1585, %v1624
  %v1642 = vxor.u32 %v1626, 2147483648
  %v1643 = vxor.u32 %v1627, 2147483648
  %v1644 = vxor.u32 %v1628, 2147483648
  %v1645 = vxor.u32 %v1629, 2147483648
  %v1646 = vxor.u32 %v1630, 2147483648
  %v1647 = vxor.u32 %v1631, 2147483648
  %v1648 = vxor.u32 %v1632, 2147483648
  %v1649 = vxor.u32 %v1633, 2147483648
  %v1650 = vxor.u32 %v1634, 2147483648
  %v1651 = vxor.u32 %v1635, 2147483648
  %v1652 = vxor.u32 %v1636, 2147483648
  %v1653 = vxor.u32 %v1637, 2147483648
  %v1654 = vxor.u32 %v1638, 2147483648
  %v1655 = vxor.u32 %v1639, 2147483648
  %v1656 = vxor.u32 %v1640, 2147483648
  %v1657 = vxor.u32 %v1641, 2147483648
  %v1658 = vmul.f32 %v1642, 1.442695
  %v1659 = vpow.pop %v1658
  %v1660 = vmul.f32 %v1643, 1.442695
  %v1661 = vpow.pop %v1660
  %v1662 = vmul.f32 %v1644, 1.442695
  %v1663 = vpow.pop %v1662
  %v1664 = vmul.f32 %v1645, 1.442695
  %v1665 = vpow.pop %v1664
  %v1666 = vmul.f32 %v1646, 1.442695
  %v1667 = vpow.pop %v1666
  %v1668 = vmul.f32 %v1647, 1.442695
  %v1669 = vpow.pop %v1668
  %v1670 = vmul.f32 %v1648, 1.442695
  %v1671 = vpow.pop %v1670
  %v1672 = vmul.f32 %v1649, 1.442695
  %v1673 = vpow.pop %v1672
  %v1674 = vmul.f32 %v1650, 1.442695
  %v1675 = vpow.pop %v1674
  %v1676 = vmul.f32 %v1651, 1.442695
  %v1677 = vpow.pop %v1676
  %v1678 = vmul.f32 %v1652, 1.442695
  %v1679 = vpow.pop %v1678
  %v1680 = vmul.f32 %v1653, 1.442695
  %v1681 = vpow.pop %v1680
  %v1682 = vmul.f32 %v1654, 1.442695
  %v1683 = vpow.pop %v1682
  %v1684 = vmul.f32 %v1655, 1.442695
  %v1685 = vpow.pop %v1684
  %v1686 = vmul.f32 %v1656, 1.442695
  %v1687 = vpow.pop %v1686
  %v1688 = vmul.f32 %v1657, 1.442695
  %v1689 = vpow.pop %v1688
  %v1690 = vadd.f32 %v1659, 1.0
  %v1691 = vadd.f32 %v1661, 1.0
  %v1692 = vadd.f32 %v1663, 1.0
  %v1693 = vadd.f32 %v1665, 1.0
  %v1694 = vadd.f32 %v1667, 1.0
  %v1695 = vadd.f32 %v1669, 1.0
  %v1696 = vadd.f32 %v1671, 1.0
  %v1697 = vadd.f32 %v1673, 1.0
  %v1698 = vadd.f32 %v1675, 1.0
  %v1699 = vadd.f32 %v1677, 1.0
  %v1700 = vadd.f32 %v1679, 1.0
  %v1701 = vadd.f32 %v1681, 1.0
  %v1702 = vadd.f32 %v1683, 1.0
  %v1703 = vadd.f32 %v1685, 1.0
  %v1704 = vadd.f32 %v1687, 1.0
  %v1705 = vadd.f32 %v1689, 1.0
  %v1706 = vrcp.pop %v1690
  %v1707 = vmul.f32 %v1690, %v1706
  %v1708 = vsub.f32 1.0, %v1707
  %v1709 = vmul.f32 %v1706, %v1708
  %v1710 = vadd.f32 %v1706, %v1709
  %vm1711 = vweird.f32 %v1690
  %vm1712 = vweird.f32 %v1706
  %vm1713 = vmor %vm1711, %vm1712
  %v1714 = vsel %vm1713, %v1706, %v1710
  %v1715 = vand.u32 2147483647, %v1690
  %vm1716 = vcmp.eq.f32.partialorder %v1715, 8.507059e+37
  %v1717 = vand.u32 %v1690, 2147483648
  %v1718 = vor.u32 1.1754944e-38, %v1717
  %v1719 = vsel %vm1716, %v1718, %v1714
  %v1720 = vmul.f32 1.0, %v1719
  %v1721 = vrcp.pop %v1691
  %v1722 = vmul.f32 %v1691, %v1721
  %v1723 = vsub.f32 1.0, %v1722
  %v1724 = vmul.f32 %v1721, %v1723
  %v1725 = vadd.f32 %v1721, %v1724
  %vm1726 = vweird.f32 %v1691
  %vm1727 = vweird.f32 %v1721
  %vm1728 = vmor %vm1726, %vm1727
  %v1729 = vsel %vm1728, %v1721, %v1725
  %v1730 = vand.u32 2147483647, %v1691
  %vm1731 = vcmp.eq.f32.partialorder %v1730, 8.507059e+37
  %v1732 = vand.u32 %v1691, 2147483648
  %v1733 = vor.u32 1.1754944e-38, %v1732
  %v1734 = vsel %vm1731, %v1733, %v1729
  %v1735 = vmul.f32 1.0, %v1734
  %v1736 = vrcp.pop %v1692
  %v1737 = vmul.f32 %v1692, %v1736
  %v1738 = vsub.f32 1.0, %v1737
  %v1739 = vmul.f32 %v1736, %v1738
  %v1740 = vadd.f32 %v1736, %v1739
  %vm1741 = vweird.f32 %v1692
  %vm1742 = vweird.f32 %v1736
  %vm1743 = vmor %vm1741, %vm1742
  %v1744 = vsel %vm1743, %v1736, %v1740
  %v1745 = vand.u32 2147483647, %v1692
  %vm1746 = vcmp.eq.f32.partialorder %v1745, 8.507059e+37
  %v1747 = vand.u32 %v1692, 2147483648
  %v1748 = vor.u32 1.1754944e-38, %v1747
  %v1749 = vsel %vm1746, %v1748, %v1744
  %v1750 = vmul.f32 1.0, %v1749
  %v1751 = vrcp.pop %v1693
  %v1752 = vmul.f32 %v1693, %v1751
  %v1753 = vsub.f32 1.0, %v1752
  %v1754 = vmul.f32 %v1751, %v1753
  %v1755 = vadd.f32 %v1751, %v1754
  %vm1756 = vweird.f32 %v1693
  %vm1757 = vweird.f32 %v1751
  %vm1758 = vmor %vm1756, %vm1757
  %v1759 = vsel %vm1758, %v1751, %v1755
  %v1760 = vand.u32 2147483647, %v1693
  %vm1761 = vcmp.eq.f32.partialorder %v1760, 8.507059e+37
  %v1762 = vand.u32 %v1693, 2147483648
  %v1763 = vor.u32 1.1754944e-38, %v1762
  %v1764 = vsel %vm1761, %v1763, %v1759
  %v1765 = vmul.f32 1.0, %v1764
  %v1766 = vrcp.pop %v1694
  %v1767 = vmul.f32 %v1694, %v1766
  %v1768 = vsub.f32 1.0, %v1767
  %v1769 = vmul.f32 %v1766, %v1768
  %v1770 = vadd.f32 %v1766, %v1769
  %vm1771 = vweird.f32 %v1694
  %vm1772 = vweird.f32 %v1766
  %vm1773 = vmor %vm1771, %vm1772
  %v1774 = vsel %vm1773, %v1766, %v1770
  %v1775 = vand.u32 2147483647, %v1694
  %vm1776 = vcmp.eq.f32.partialorder %v1775, 8.507059e+37
  %v1777 = vand.u32 %v1694, 2147483648
  %v1778 = vor.u32 1.1754944e-38, %v1777
  %v1779 = vsel %vm1776, %v1778, %v1774
  %v1780 = vmul.f32 1.0, %v1779
  %v1781 = vrcp.pop %v1695
  %v1782 = vmul.f32 %v1695, %v1781
  %v1783 = vsub.f32 1.0, %v1782
  %v1784 = vmul.f32 %v1781, %v1783
  %v1785 = vadd.f32 %v1781, %v1784
  %vm1786 = vweird.f32 %v1695
  %vm1787 = vweird.f32 %v1781
  %vm1788 = vmor %vm1786, %vm1787
  %v1789 = vsel %vm1788, %v1781, %v1785
  %v1790 = vand.u32 2147483647, %v1695
  %vm1791 = vcmp.eq.f32.partialorder %v1790, 8.507059e+37
  %v1792 = vand.u32 %v1695, 2147483648
  %v1793 = vor.u32 1.1754944e-38, %v1792
  %v1794 = vsel %vm1791, %v1793, %v1789
  %v1795 = vmul.f32 1.0, %v1794
  %v1796 = vrcp.pop %v1696
  %v1797 = vmul.f32 %v1696, %v1796
  %v1798 = vsub.f32 1.0, %v1797
  %v1799 = vmul.f32 %v1796, %v1798
  %v1800 = vadd.f32 %v1796, %v1799
  %vm1801 = vweird.f32 %v1696
  %vm1802 = vweird.f32 %v1796
  %vm1803 = vmor %vm1801, %vm1802
  %v1804 = vsel %vm1803, %v1796, %v1800
  %v1805 = vand.u32 2147483647, %v1696
  %vm1806 = vcmp.eq.f32.partialorder %v1805, 8.507059e+37
  %v1807 = vand.u32 %v1696, 2147483648
  %v1808 = vor.u32 1.1754944e-38, %v1807
  %v1809 = vsel %vm1806, %v1808, %v1804
  %v1810 = vmul.f32 1.0, %v1809
  %v1811 = vrcp.pop %v1697
  %v1812 = vmul.f32 %v1697, %v1811
  %v1813 = vsub.f32 1.0, %v1812
  %v1814 = vmul.f32 %v1811, %v1813
  %v1815 = vadd.f32 %v1811, %v1814
  %vm1816 = vweird.f32 %v1697
  %vm1817 = vweird.f32 %v1811
  %vm1818 = vmor %vm1816, %vm1817
  %v1819 = vsel %vm1818, %v1811, %v1815
  %v1820 = vand.u32 2147483647, %v1697
  %vm1821 = vcmp.eq.f32.partialorder %v1820, 8.507059e+37
  %v1822 = vand.u32 %v1697, 2147483648
  %v1823 = vor.u32 1.1754944e-38, %v1822
  %v1824 = vsel %vm1821, %v1823, %v1819
  %v1825 = vmul.f32 1.0, %v1824
  %v1826 = vrcp.pop %v1698
  %v1827 = vmul.f32 %v1698, %v1826
  %v1828 = vsub.f32 1.0, %v1827
  %v1829 = vmul.f32 %v1826, %v1828
  %v1830 = vadd.f32 %v1826, %v1829
  %vm1831 = vweird.f32 %v1698
  %vm1832 = vweird.f32 %v1826
  %vm1833 = vmor %vm1831, %vm1832
  %v1834 = vsel %vm1833, %v1826, %v1830
  %v1835 = vand.u32 2147483647, %v1698
  %vm1836 = vcmp.eq.f32.partialorder %v1835, 8.507059e+37
  %v1837 = vand.u32 %v1698, 2147483648
  %v1838 = vor.u32 1.1754944e-38, %v1837
  %v1839 = vsel %vm1836, %v1838, %v1834
  %v1840 = vmul.f32 1.0, %v1839
  %v1841 = vrcp.pop %v1699
  %v1842 = vmul.f32 %v1699, %v1841
  %v1843 = vsub.f32 1.0, %v1842
  %v1844 = vmul.f32 %v1841, %v1843
  %v1845 = vadd.f32 %v1841, %v1844
  %vm1846 = vweird.f32 %v1699
  %vm1847 = vweird.f32 %v1841
  %vm1848 = vmor %vm1846, %vm1847
  %v1849 = vsel %vm1848, %v1841, %v1845
  %v1850 = vand.u32 2147483647, %v1699
  %vm1851 = vcmp.eq.f32.partialorder %v1850, 8.507059e+37
  %v1852 = vand.u32 %v1699, 2147483648
  %v1853 = vor.u32 1.1754944e-38, %v1852
  %v1854 = vsel %vm1851, %v1853, %v1849
  %v1855 = vmul.f32 1.0, %v1854
  %v1856 = vrcp.pop %v1700
  %v1857 = vmul.f32 %v1700, %v1856
  %v1858 = vsub.f32 1.0, %v1857
  %v1859 = vmul.f32 %v1856, %v1858
  %v1860 = vadd.f32 %v1856, %v1859
  %vm1861 = vweird.f32 %v1700
  %vm1862 = vweird.f32 %v1856
  %vm1863 = vmor %vm1861, %vm1862
  %v1864 = vsel %vm1863, %v1856, %v1860
  %v1865 = vand.u32 2147483647, %v1700
  %vm1866 = vcmp.eq.f32.partialorder %v1865, 8.507059e+37
  %v1867 = vand.u32 %v1700, 2147483648
  %v1868 = vor.u32 1.1754944e-38, %v1867
  %v1869 = vsel %vm1866, %v1868, %v1864
  %v1870 = vmul.f32 1.0, %v1869
  %v1871 = vrcp.pop %v1701
  %v1872 = vmul.f32 %v1701, %v1871
  %v1873 = vsub.f32 1.0, %v1872
  %v1874 = vmul.f32 %v1871, %v1873
  %v1875 = vadd.f32 %v1871, %v1874
  %vm1876 = vweird.f32 %v1701
  %vm1877 = vweird.f32 %v1871
  %vm1878 = vmor %vm1876, %vm1877
  %v1879 = vsel %vm1878, %v1871, %v1875
  %v1880 = vand.u32 2147483647, %v1701
  %vm1881 = vcmp.eq.f32.partialorder %v1880, 8.507059e+37
  %v1882 = vand.u32 %v1701, 2147483648
  %v1883 = vor.u32 1.1754944e-38, %v1882
  %v1884 = vsel %vm1881, %v1883, %v1879
  %v1885 = vmul.f32 1.0, %v1884
  %v1886 = vrcp.pop %v1702
  %v1887 = vmul.f32 %v1702, %v1886
  %v1888 = vsub.f32 1.0, %v1887
  %v1889 = vmul.f32 %v1886, %v1888
  %v1890 = vadd.f32 %v1886, %v1889
  %vm1891 = vweird.f32 %v1702
  %vm1892 = vweird.f32 %v1886
  %vm1893 = vmor %vm1891, %vm1892
  %v1894 = vsel %vm1893, %v1886, %v1890
  %v1895 = vand.u32 2147483647, %v1702
  %vm1896 = vcmp.eq.f32.partialorder %v1895, 8.507059e+37
  %v1897 = vand.u32 %v1702, 2147483648
  %v1898 = vor.u32 1.1754944e-38, %v1897
  %v1899 = vsel %vm1896, %v1898, %v1894
  %v1900 = vmul.f32 1.0, %v1899
  %v1901 = vrcp.pop %v1703
  %v1902 = vmul.f32 %v1703, %v1901
  %v1903 = vsub.f32 1.0, %v1902
  %v1904 = vmul.f32 %v1901, %v1903
  %v1905 = vadd.f32 %v1901, %v1904
  %vm1906 = vweird.f32 %v1703
  %vm1907 = vweird.f32 %v1901
  %vm1908 = vmor %vm1906, %vm1907
  %v1909 = vsel %vm1908, %v1901, %v1905
  %v1910 = vand.u32 2147483647, %v1703
  %vm1911 = vcmp.eq.f32.partialorder %v1910, 8.507059e+37
  %v1912 = vand.u32 %v1703, 2147483648
  %v1913 = vor.u32 1.1754944e-38, %v1912
  %v1914 = vsel %vm1911, %v1913, %v1909
  %v1915 = vmul.f32 1.0, %v1914
  %v1916 = vrcp.pop %v1704
  %v1917 = vmul.f32 %v1704, %v1916
  %v1918 = vsub.f32 1.0, %v1917
  %v1919 = vmul.f32 %v1916, %v1918
  %v1920 = vadd.f32 %v1916, %v1919
  %vm1921 = vweird.f32 %v1704
  %vm1922 = vweird.f32 %v1916
  %vm1923 = vmor %vm1921, %vm1922
  %v1924 = vsel %vm1923, %v1916, %v1920
  %v1925 = vand.u32 2147483647, %v1704
  %vm1926 = vcmp.eq.f32.partialorder %v1925, 8.507059e+37
  %v1927 = vand.u32 %v1704, 2147483648
  %v1928 = vor.u32 1.1754944e-38, %v1927
  %v1929 = vsel %vm1926, %v1928, %v1924
  %v1930 = vmul.f32 1.0, %v1929
  %v1931 = vrcp.pop %v1705
  %v1932 = vmul.f32 %v1705, %v1931
  %v1933 = vsub.f32 1.0, %v1932
  %v1934 = vmul.f32 %v1931, %v1933
  %v1935 = vadd.f32 %v1931, %v1934
  %vm1936 = vweird.f32 %v1705
  %vm1937 = vweird.f32 %v1931
  %vm1938 = vmor %vm1936, %vm1937
  %v1939 = vsel %vm1938, %v1931, %v1935
  %v1940 = vand.u32 2147483647, %v1705
  %vm1941 = vcmp.eq.f32.partialorder %v1940, 8.507059e+37
  %v1942 = vand.u32 %v1705, 2147483648
  %v1943 = vor.u32 1.1754944e-38, %v1942
  %v1944 = vsel %vm1941, %v1943, %v1939
  %v1945 = vmul.f32 1.0, %v1944
  %v1946 = vld [vmem:[%s6] sm:$0xf]
  %v1947 = vld [vmem:[%s6 + $0x4] sm:$0xf]
  %v1948 = vld [vmem:[%s6 + $0x8] sm:$0xf]
  %v1949 = vld [vmem:[%s6 + $0xc] sm:$0xf]
  %v1950 = vld [vmem:[%s6 + $0x10] sm:$0xf]
  %v1951 = vld [vmem:[%s6 + $0x14] sm:$0xf]
  %v1952 = vld [vmem:[%s6 + $0x18] sm:$0xf]
  %v1953 = vld [vmem:[%s6 + $0x1c] sm:$0xf]
  %v1954 = vpack.c.bf16 %v44, %v42
  %v1955 = vpack.c.bf16 %v45, %v43
  %v1956 = vpack.c.bf16 %v48, %v46
  %v1957 = vpack.c.bf16 %v49, %v47
  %v1958 = vpack.c.bf16 %v52, %v50
  %v1959 = vpack.c.bf16 %v53, %v51
  %v1960 = vpack.c.bf16 %v56, %v54
  %v1961 = vpack.c.bf16 %v57, %v55
  %v1962 = vld [vmem:[%s7] sm:$0xff]
  %v1963 = vld [vmem:[%s7 + $0x8] sm:$0xff]
  %v1964 = vld [vmem:[%s7 + $0x10] sm:$0xff]
  %v1965 = vld [vmem:[%s7 + $0x18] sm:$0xff]
  %v1966 = vld [vmem:[%s7 + $0x20] sm:$0xff]
  %v1967 = vld [vmem:[%s7 + $0x28] sm:$0xff]
  %v1968 = vld [vmem:[%s7 + $0x30] sm:$0xff]
  %v1969 = vld [vmem:[%s7 + $0x38] sm:$0xff]
  %1971 = vset.pattern.permute.xlu0 0
  %1972 = vperm.xlu0 %1971, %v1962
  %v1973 = vpop.permute.xlu0 %1972
  %1976 = vset.pattern.permute.xlu0 0
  %1977 = vperm.xlu0 %1976, %v1963
  %v1978 = vpop.permute.xlu0 %1977
  %1981 = vset.pattern.permute.xlu0 0
  %1982 = vperm.xlu0 %1981, %v1964
  %v1983 = vpop.permute.xlu0 %1982
  %1986 = vset.pattern.permute.xlu0 0
  %1987 = vperm.xlu0 %1986, %v1965
  %v1988 = vpop.permute.xlu0 %1987
  %1991 = vset.pattern.permute.xlu0 0
  %1992 = vperm.xlu0 %1991, %v1966
  %v1993 = vpop.permute.xlu0 %1992
  %1996 = vset.pattern.permute.xlu0 0
  %1997 = vperm.xlu0 %1996, %v1967
  %v1998 = vpop.permute.xlu0 %1997
  %2001 = vset.pattern.permute.xlu0 0
  %2002 = vperm.xlu0 %2001, %v1968
  %v2003 = vpop.permute.xlu0 %2002
  %2006 = vset.pattern.permute.xlu0 0
  %2007 = vperm.xlu0 %2006, %v1969
  %v2008 = vpop.permute.xlu0 %2007
  %v2018 = vunpack.c.l.b16 %v1946
  %v2019 = vunpack.c.l.b16 %v1947
  %v2020 = vunpack.c.l.b16 %v1948
  %v2021 = vunpack.c.l.b16 %v1949
  %v2022 = vunpack.c.l.b16 %v1950
  %v2023 = vunpack.c.l.b16 %v1951
  %v2024 = vunpack.c.l.b16 %v1952
  %v2025 = vunpack.c.l.b16 %v1953
  %v2026 = vpack.c.b16 %v2019, %v2018
  %v2027 = vpack.c.b16 %v2021, %v2020
  %v2028 = vpack.c.b16 %v2023, %v2022
  %v2029 = vpack.c.b16 %v2025, %v2024
  %v2031 = vsel %vm1247, %v2026, 0
  %v2034 = vsel %vm1247, %v2027, 0
  %v2037 = vsel %vm1247, %v2028, 0
  %v2040 = vsel %vm1247, %v2029, 0
  %2042 = vmatpush.bf16.msra.mxu0 0
  %2043 = vmatpush.bf16.msra.mxu0 0
  %2044 = vmatpush.bf16.msra.mxu0 0
  %2045 = vmatpush.bf16.msra.mxu0 0
  %2046 = vmatpush.bf16.msra.mxu0 %v1960
  %2047 = vmatpush.bf16.msra.mxu0 %v1958
  %2048 = vmatpush.bf16.msra.mxu0 %v1956
  %2049 = vmatpush.bf16.msra.mxu0 %v1954
  %2050 = vmatmul.bf16.gmra.mxu0 %v2031
  %v2051 = vpop.f32.mrf.mxu0
  %v2052 = vadd.f32 %v1973, %v2051
  %v2053 = vpop.f32.mrf.mxu0
  %v2054 = vadd.f32 %v1978, %v2053
  %2055 = vmatmul.bf16.gmra.mxu0 %v2034
  %v2056 = vpop.f32.mrf.mxu0
  %v2057 = vadd.f32 %v1983, %v2056
  %v2058 = vpop.f32.mrf.mxu0
  %v2059 = vadd.f32 %v1988, %v2058
  %2060 = vmatmul.bf16.gmra.mxu0 %v2037
  %v2061 = vpop.f32.mrf.mxu0
  %v2062 = vadd.f32 %v1993, %v2061
  %v2063 = vpop.f32.mrf.mxu0
  %v2064 = vadd.f32 %v1998, %v2063
  %2065 = vmatmul.bf16.gmra.mxu0 %v2040
  %v2066 = vpop.f32.mrf.mxu0
  %v2067 = vadd.f32 %v2003, %v2066
  %v2068 = vpop.f32.mrf.mxu0
  %v2069 = vadd.f32 %v2008, %v2068
  %2070 = vdwg.mxu0
  %2071 = vmatpush.bf16.msra.mxu0 0
  %2072 = vmatpush.bf16.msra.mxu0 0
  %2073 = vmatpush.bf16.msra.mxu0 0
  %2074 = vmatpush.bf16.msra.mxu0 0
  %2075 = vmatpush.bf16.msra.mxu0 %v1961
  %2076 = vmatpush.bf16.msra.mxu0 %v1959
  %2077 = vmatpush.bf16.msra.mxu0 %v1957
  %2078 = vmatpush.bf16.msra.mxu0 %v1955
  %2079 = vmatmul.bf16.gmra.mxu0 %v2031
  %v2080 = vpop.f32.mrf.mxu0
  %v2081 = vadd.f32 %v1973, %v2080
  %v2082 = vpop.f32.mrf.mxu0
  %v2083 = vadd.f32 %v1978, %v2082
  %2084 = vmatmul.bf16.gmra.mxu0 %v2034
  %v2085 = vpop.f32.mrf.mxu0
  %v2086 = vadd.f32 %v1983, %v2085
  %v2087 = vpop.f32.mrf.mxu0
  %v2088 = vadd.f32 %v1988, %v2087
  %2089 = vmatmul.bf16.gmra.mxu0 %v2037
  %v2090 = vpop.f32.mrf.mxu0
  %v2091 = vadd.f32 %v1993, %v2090
  %v2092 = vpop.f32.mrf.mxu0
  %v2093 = vadd.f32 %v1998, %v2092
  %2094 = vmatmul.bf16.gmra.mxu0 %v2040
  %v2095 = vpop.f32.mrf.mxu0
  %v2096 = vadd.f32 %v2003, %v2095
  %v2097 = vpop.f32.mrf.mxu0
  %v2098 = vadd.f32 %v2008, %v2097
  %2099 = vdwg.mxu0
  %v2100 = vxor.u32 %v2052, 2147483648
  %v2101 = vxor.u32 %v2081, 2147483648
  %v2102 = vxor.u32 %v2054, 2147483648
  %v2103 = vxor.u32 %v2083, 2147483648
  %v2104 = vxor.u32 %v2057, 2147483648
  %v2105 = vxor.u32 %v2086, 2147483648
  %v2106 = vxor.u32 %v2059, 2147483648
  %v2107 = vxor.u32 %v2088, 2147483648
  %v2108 = vxor.u32 %v2062, 2147483648
  %v2109 = vxor.u32 %v2091, 2147483648
  %v2110 = vxor.u32 %v2064, 2147483648
  %v2111 = vxor.u32 %v2093, 2147483648
  %v2112 = vxor.u32 %v2067, 2147483648
  %v2113 = vxor.u32 %v2096, 2147483648
  %v2114 = vxor.u32 %v2069, 2147483648
  %v2115 = vxor.u32 %v2098, 2147483648
  %v2116 = vmul.f32 %v2100, 1.442695
  %v2117 = vpow.pop %v2116
  %v2118 = vmul.f32 %v2101, 1.442695
  %v2119 = vpow.pop %v2118
  %v2120 = vmul.f32 %v2102, 1.442695
  %v2121 = vpow.pop %v2120
  %v2122 = vmul.f32 %v2103, 1.442695
  %v2123 = vpow.pop %v2122
  %v2124 = vmul.f32 %v2104, 1.442695
  %v2125 = vpow.pop %v2124
  %v2126 = vmul.f32 %v2105, 1.442695
  %v2127 = vpow.pop %v2126
  %v2128 = vmul.f32 %v2106, 1.442695
  %v2129 = vpow.pop %v2128
  %v2130 = vmul.f32 %v2107, 1.442695
  %v2131 = vpow.pop %v2130
  %v2132 = vmul.f32 %v2108, 1.442695
  %v2133 = vpow.pop %v2132
  %v2134 = vmul.f32 %v2109, 1.442695
  %v2135 = vpow.pop %v2134
  %v2136 = vmul.f32 %v2110, 1.442695
  %v2137 = vpow.pop %v2136
  %v2138 = vmul.f32 %v2111, 1.442695
  %v2139 = vpow.pop %v2138
  %v2140 = vmul.f32 %v2112, 1.442695
  %v2141 = vpow.pop %v2140
  %v2142 = vmul.f32 %v2113, 1.442695
  %v2143 = vpow.pop %v2142
  %v2144 = vmul.f32 %v2114, 1.442695
  %v2145 = vpow.pop %v2144
  %v2146 = vmul.f32 %v2115, 1.442695
  %v2147 = vpow.pop %v2146
  %v2148 = vadd.f32 %v2117, 1.0
  %v2149 = vadd.f32 %v2119, 1.0
  %v2150 = vadd.f32 %v2121, 1.0
  %v2151 = vadd.f32 %v2123, 1.0
  %v2152 = vadd.f32 %v2125, 1.0
  %v2153 = vadd.f32 %v2127, 1.0
  %v2154 = vadd.f32 %v2129, 1.0
  %v2155 = vadd.f32 %v2131, 1.0
  %v2156 = vadd.f32 %v2133, 1.0
  %v2157 = vadd.f32 %v2135, 1.0
  %v2158 = vadd.f32 %v2137, 1.0
  %v2159 = vadd.f32 %v2139, 1.0
  %v2160 = vadd.f32 %v2141, 1.0
  %v2161 = vadd.f32 %v2143, 1.0
  %v2162 = vadd.f32 %v2145, 1.0
  %v2163 = vadd.f32 %v2147, 1.0
  %v2164 = vrcp.pop %v2148
  %v2165 = vmul.f32 %v2148, %v2164
  %v2166 = vsub.f32 1.0, %v2165
  %v2167 = vmul.f32 %v2164, %v2166
  %v2168 = vadd.f32 %v2164, %v2167
  %vm2169 = vweird.f32 %v2148
  %vm2170 = vweird.f32 %v2164
  %vm2171 = vmor %vm2169, %vm2170
  %v2172 = vsel %vm2171, %v2164, %v2168
  %v2173 = vand.u32 2147483647, %v2148
  %vm2174 = vcmp.eq.f32.partialorder %v2173, 8.507059e+37
  %v2175 = vand.u32 %v2148, 2147483648
  %v2176 = vor.u32 1.1754944e-38, %v2175
  %v2177 = vsel %vm2174, %v2176, %v2172
  %v2178 = vmul.f32 1.0, %v2177
  %v2179 = vrcp.pop %v2149
  %v2180 = vmul.f32 %v2149, %v2179
  %v2181 = vsub.f32 1.0, %v2180
  %v2182 = vmul.f32 %v2179, %v2181
  %v2183 = vadd.f32 %v2179, %v2182
  %vm2184 = vweird.f32 %v2149
  %vm2185 = vweird.f32 %v2179
  %vm2186 = vmor %vm2184, %vm2185
  %v2187 = vsel %vm2186, %v2179, %v2183
  %v2188 = vand.u32 2147483647, %v2149
  %vm2189 = vcmp.eq.f32.partialorder %v2188, 8.507059e+37
  %v2190 = vand.u32 %v2149, 2147483648
  %v2191 = vor.u32 1.1754944e-38, %v2190
  %v2192 = vsel %vm2189, %v2191, %v2187
  %v2193 = vmul.f32 1.0, %v2192
  %v2194 = vrcp.pop %v2150
  %v2195 = vmul.f32 %v2150, %v2194
  %v2196 = vsub.f32 1.0, %v2195
  %v2197 = vmul.f32 %v2194, %v2196
  %v2198 = vadd.f32 %v2194, %v2197
  %vm2199 = vweird.f32 %v2150
  %vm2200 = vweird.f32 %v2194
  %vm2201 = vmor %vm2199, %vm2200
  %v2202 = vsel %vm2201, %v2194, %v2198
  %v2203 = vand.u32 2147483647, %v2150
  %vm2204 = vcmp.eq.f32.partialorder %v2203, 8.507059e+37
  %v2205 = vand.u32 %v2150, 2147483648
  %v2206 = vor.u32 1.1754944e-38, %v2205
  %v2207 = vsel %vm2204, %v2206, %v2202
  %v2208 = vmul.f32 1.0, %v2207
  %v2209 = vrcp.pop %v2151
  %v2210 = vmul.f32 %v2151, %v2209
  %v2211 = vsub.f32 1.0, %v2210
  %v2212 = vmul.f32 %v2209, %v2211
  %v2213 = vadd.f32 %v2209, %v2212
  %vm2214 = vweird.f32 %v2151
  %vm2215 = vweird.f32 %v2209
  %vm2216 = vmor %vm2214, %vm2215
  %v2217 = vsel %vm2216, %v2209, %v2213
  %v2218 = vand.u32 2147483647, %v2151
  %vm2219 = vcmp.eq.f32.partialorder %v2218, 8.507059e+37
  %v2220 = vand.u32 %v2151, 2147483648
  %v2221 = vor.u32 1.1754944e-38, %v2220
  %v2222 = vsel %vm2219, %v2221, %v2217
  %v2223 = vmul.f32 1.0, %v2222
  %v2224 = vrcp.pop %v2152
  %v2225 = vmul.f32 %v2152, %v2224
  %v2226 = vsub.f32 1.0, %v2225
  %v2227 = vmul.f32 %v2224, %v2226
  %v2228 = vadd.f32 %v2224, %v2227
  %vm2229 = vweird.f32 %v2152
  %vm2230 = vweird.f32 %v2224
  %vm2231 = vmor %vm2229, %vm2230
  %v2232 = vsel %vm2231, %v2224, %v2228
  %v2233 = vand.u32 2147483647, %v2152
  %vm2234 = vcmp.eq.f32.partialorder %v2233, 8.507059e+37
  %v2235 = vand.u32 %v2152, 2147483648
  %v2236 = vor.u32 1.1754944e-38, %v2235
  %v2237 = vsel %vm2234, %v2236, %v2232
  %v2238 = vmul.f32 1.0, %v2237
  %v2239 = vrcp.pop %v2153
  %v2240 = vmul.f32 %v2153, %v2239
  %v2241 = vsub.f32 1.0, %v2240
  %v2242 = vmul.f32 %v2239, %v2241
  %v2243 = vadd.f32 %v2239, %v2242
  %vm2244 = vweird.f32 %v2153
  %vm2245 = vweird.f32 %v2239
  %vm2246 = vmor %vm2244, %vm2245
  %v2247 = vsel %vm2246, %v2239, %v2243
  %v2248 = vand.u32 2147483647, %v2153
  %vm2249 = vcmp.eq.f32.partialorder %v2248, 8.507059e+37
  %v2250 = vand.u32 %v2153, 2147483648
  %v2251 = vor.u32 1.1754944e-38, %v2250
  %v2252 = vsel %vm2249, %v2251, %v2247
  %v2253 = vmul.f32 1.0, %v2252
  %v2254 = vrcp.pop %v2154
  %v2255 = vmul.f32 %v2154, %v2254
  %v2256 = vsub.f32 1.0, %v2255
  %v2257 = vmul.f32 %v2254, %v2256
  %v2258 = vadd.f32 %v2254, %v2257
  %vm2259 = vweird.f32 %v2154
  %vm2260 = vweird.f32 %v2254
  %vm2261 = vmor %vm2259, %vm2260
  %v2262 = vsel %vm2261, %v2254, %v2258
  %v2263 = vand.u32 2147483647, %v2154
  %vm2264 = vcmp.eq.f32.partialorder %v2263, 8.507059e+37
  %v2265 = vand.u32 %v2154, 2147483648
  %v2266 = vor.u32 1.1754944e-38, %v2265
  %v2267 = vsel %vm2264, %v2266, %v2262
  %v2268 = vmul.f32 1.0, %v2267
  %v2269 = vrcp.pop %v2155
  %v2270 = vmul.f32 %v2155, %v2269
  %v2271 = vsub.f32 1.0, %v2270
  %v2272 = vmul.f32 %v2269, %v2271
  %v2273 = vadd.f32 %v2269, %v2272
  %vm2274 = vweird.f32 %v2155
  %vm2275 = vweird.f32 %v2269
  %vm2276 = vmor %vm2274, %vm2275
  %v2277 = vsel %vm2276, %v2269, %v2273
  %v2278 = vand.u32 2147483647, %v2155
  %vm2279 = vcmp.eq.f32.partialorder %v2278, 8.507059e+37
  %v2280 = vand.u32 %v2155, 2147483648
  %v2281 = vor.u32 1.1754944e-38, %v2280
  %v2282 = vsel %vm2279, %v2281, %v2277
  %v2283 = vmul.f32 1.0, %v2282
  %v2284 = vrcp.pop %v2156
  %v2285 = vmul.f32 %v2156, %v2284
  %v2286 = vsub.f32 1.0, %v2285
  %v2287 = vmul.f32 %v2284, %v2286
  %v2288 = vadd.f32 %v2284, %v2287
  %vm2289 = vweird.f32 %v2156
  %vm2290 = vweird.f32 %v2284
  %vm2291 = vmor %vm2289, %vm2290
  %v2292 = vsel %vm2291, %v2284, %v2288
  %v2293 = vand.u32 2147483647, %v2156
  %vm2294 = vcmp.eq.f32.partialorder %v2293, 8.507059e+37
  %v2295 = vand.u32 %v2156, 2147483648
  %v2296 = vor.u32 1.1754944e-38, %v2295
  %v2297 = vsel %vm2294, %v2296, %v2292
  %v2298 = vmul.f32 1.0, %v2297
  %v2299 = vrcp.pop %v2157
  %v2300 = vmul.f32 %v2157, %v2299
  %v2301 = vsub.f32 1.0, %v2300
  %v2302 = vmul.f32 %v2299, %v2301
  %v2303 = vadd.f32 %v2299, %v2302
  %vm2304 = vweird.f32 %v2157
  %vm2305 = vweird.f32 %v2299
  %vm2306 = vmor %vm2304, %vm2305
  %v2307 = vsel %vm2306, %v2299, %v2303
  %v2308 = vand.u32 2147483647, %v2157
  %vm2309 = vcmp.eq.f32.partialorder %v2308, 8.507059e+37
  %v2310 = vand.u32 %v2157, 2147483648
  %v2311 = vor.u32 1.1754944e-38, %v2310
  %v2312 = vsel %vm2309, %v2311, %v2307
  %v2313 = vmul.f32 1.0, %v2312
  %v2314 = vrcp.pop %v2158
  %v2315 = vmul.f32 %v2158, %v2314
  %v2316 = vsub.f32 1.0, %v2315
  %v2317 = vmul.f32 %v2314, %v2316
  %v2318 = vadd.f32 %v2314, %v2317
  %vm2319 = vweird.f32 %v2158
  %vm2320 = vweird.f32 %v2314
  %vm2321 = vmor %vm2319, %vm2320
  %v2322 = vsel %vm2321, %v2314, %v2318
  %v2323 = vand.u32 2147483647, %v2158
  %vm2324 = vcmp.eq.f32.partialorder %v2323, 8.507059e+37
  %v2325 = vand.u32 %v2158, 2147483648
  %v2326 = vor.u32 1.1754944e-38, %v2325
  %v2327 = vsel %vm2324, %v2326, %v2322
  %v2328 = vmul.f32 1.0, %v2327
  %v2329 = vrcp.pop %v2159
  %v2330 = vmul.f32 %v2159, %v2329
  %v2331 = vsub.f32 1.0, %v2330
  %v2332 = vmul.f32 %v2329, %v2331
  %v2333 = vadd.f32 %v2329, %v2332
  %vm2334 = vweird.f32 %v2159
  %vm2335 = vweird.f32 %v2329
  %vm2336 = vmor %vm2334, %vm2335
  %v2337 = vsel %vm2336, %v2329, %v2333
  %v2338 = vand.u32 2147483647, %v2159
  %vm2339 = vcmp.eq.f32.partialorder %v2338, 8.507059e+37
  %v2340 = vand.u32 %v2159, 2147483648
  %v2341 = vor.u32 1.1754944e-38, %v2340
  %v2342 = vsel %vm2339, %v2341, %v2337
  %v2343 = vmul.f32 1.0, %v2342
  %v2344 = vrcp.pop %v2160
  %v2345 = vmul.f32 %v2160, %v2344
  %v2346 = vsub.f32 1.0, %v2345
  %v2347 = vmul.f32 %v2344, %v2346
  %v2348 = vadd.f32 %v2344, %v2347
  %vm2349 = vweird.f32 %v2160
  %vm2350 = vweird.f32 %v2344
  %vm2351 = vmor %vm2349, %vm2350
  %v2352 = vsel %vm2351, %v2344, %v2348
  %v2353 = vand.u32 2147483647, %v2160
  %vm2354 = vcmp.eq.f32.partialorder %v2353, 8.507059e+37
  %v2355 = vand.u32 %v2160, 2147483648
  %v2356 = vor.u32 1.1754944e-38, %v2355
  %v2357 = vsel %vm2354, %v2356, %v2352
  %v2358 = vmul.f32 1.0, %v2357
  %v2359 = vrcp.pop %v2161
  %v2360 = vmul.f32 %v2161, %v2359
  %v2361 = vsub.f32 1.0, %v2360
  %v2362 = vmul.f32 %v2359, %v2361
  %v2363 = vadd.f32 %v2359, %v2362
  %vm2364 = vweird.f32 %v2161
  %vm2365 = vweird.f32 %v2359
  %vm2366 = vmor %vm2364, %vm2365
  %v2367 = vsel %vm2366, %v2359, %v2363
  %v2368 = vand.u32 2147483647, %v2161
  %vm2369 = vcmp.eq.f32.partialorder %v2368, 8.507059e+37
  %v2370 = vand.u32 %v2161, 2147483648
  %v2371 = vor.u32 1.1754944e-38, %v2370
  %v2372 = vsel %vm2369, %v2371, %v2367
  %v2373 = vmul.f32 1.0, %v2372
  %v2374 = vrcp.pop %v2162
  %v2375 = vmul.f32 %v2162, %v2374
  %v2376 = vsub.f32 1.0, %v2375
  %v2377 = vmul.f32 %v2374, %v2376
  %v2378 = vadd.f32 %v2374, %v2377
  %vm2379 = vweird.f32 %v2162
  %vm2380 = vweird.f32 %v2374
  %vm2381 = vmor %vm2379, %vm2380
  %v2382 = vsel %vm2381, %v2374, %v2378
  %v2383 = vand.u32 2147483647, %v2162
  %vm2384 = vcmp.eq.f32.partialorder %v2383, 8.507059e+37
  %v2385 = vand.u32 %v2162, 2147483648
  %v2386 = vor.u32 1.1754944e-38, %v2385
  %v2387 = vsel %vm2384, %v2386, %v2382
  %v2388 = vmul.f32 1.0, %v2387
  %v2389 = vrcp.pop %v2163
  %v2390 = vmul.f32 %v2163, %v2389
  %v2391 = vsub.f32 1.0, %v2390
  %v2392 = vmul.f32 %v2389, %v2391
  %v2393 = vadd.f32 %v2389, %v2392
  %vm2394 = vweird.f32 %v2163
  %vm2395 = vweird.f32 %v2389
  %vm2396 = vmor %vm2394, %vm2395
  %v2397 = vsel %vm2396, %v2389, %v2393
  %v2398 = vand.u32 2147483647, %v2163
  %vm2399 = vcmp.eq.f32.partialorder %v2398, 8.507059e+37
  %v2400 = vand.u32 %v2163, 2147483648
  %v2401 = vor.u32 1.1754944e-38, %v2400
  %v2402 = vsel %vm2399, %v2401, %v2397
  %v2403 = vmul.f32 1.0, %v2402
  %v2404 = vadd.f32 %v1720, %v2178
  %v2405 = vadd.f32 %v1735, %v2193
  %v2406 = vadd.f32 %v1750, %v2208
  %v2407 = vadd.f32 %v1765, %v2223
  %v2408 = vadd.f32 %v1780, %v2238
  %v2409 = vadd.f32 %v1795, %v2253
  %v2410 = vadd.f32 %v1810, %v2268
  %v2411 = vadd.f32 %v1825, %v2283
  %v2412 = vadd.f32 %v1840, %v2298
  %v2413 = vadd.f32 %v1855, %v2313
  %v2414 = vadd.f32 %v1870, %v2328
  %v2415 = vadd.f32 %v1885, %v2343
  %v2416 = vadd.f32 %v1900, %v2358
  %v2417 = vadd.f32 %v1915, %v2373
  %v2418 = vadd.f32 %v1930, %v2388
  %v2419 = vadd.f32 %v1945, %v2403
  %2421 = vset.pattern.permute.xlu0 0
  %2422 = vperm.xlu0 %2421, %v241
  %v2423 = vpop.permute.xlu0 %2422
  %2426 = vset.pattern.permute.xlu0 0
  %2427 = vperm.xlu0 %2426, %v256
  %v2428 = vpop.permute.xlu0 %2427
  %2431 = vset.pattern.permute.xlu0 0
  %2432 = vperm.xlu0 %2431, %v271
  %v2433 = vpop.permute.xlu0 %2432
  %2436 = vset.pattern.permute.xlu0 0
  %2437 = vperm.xlu0 %2436, %v286
  %v2438 = vpop.permute.xlu0 %2437
  %2441 = vset.pattern.permute.xlu0 0
  %2442 = vperm.xlu0 %2441, %v301
  %v2443 = vpop.permute.xlu0 %2442
  %2446 = vset.pattern.permute.xlu0 0
  %2447 = vperm.xlu0 %2446, %v316
  %v2448 = vpop.permute.xlu0 %2447
  %2451 = vset.pattern.permute.xlu0 0
  %2452 = vperm.xlu0 %2451, %v331
  %v2453 = vpop.permute.xlu0 %2452
  %2456 = vset.pattern.permute.xlu0 0
  %2457 = vperm.xlu0 %2456, %v346
  %v2458 = vpop.permute.xlu0 %2457
  %v2460 = vadd.f32 %v2404, %v2423
  %v2461 = vadd.f32 %v2405, %v2423
  %v2462 = vadd.f32 %v2406, %v2428
  %v2463 = vadd.f32 %v2407, %v2428
  %v2464 = vadd.f32 %v2408, %v2433
  %v2465 = vadd.f32 %v2409, %v2433
  %v2466 = vadd.f32 %v2410, %v2438
  %v2467 = vadd.f32 %v2411, %v2438
  %v2468 = vadd.f32 %v2412, %v2443
  %v2469 = vadd.f32 %v2413, %v2443
  %v2470 = vadd.f32 %v2414, %v2448
  %v2471 = vadd.f32 %v2415, %v2448
  %v2472 = vadd.f32 %v2416, %v2453
  %v2473 = vadd.f32 %v2417, %v2453
  %v2474 = vadd.f32 %v2418, %v2458
  %v2475 = vadd.f32 %v2419, %v2458
  %v2476 = vmul.f32 %v2460, %v42
  %v2477 = vmul.f32 %v2461, %v43
  %v2478 = vmul.f32 %v2462, %v44
  %v2479 = vmul.f32 %v2463, %v45
  %v2480 = vmul.f32 %v2464, %v46
  %v2481 = vmul.f32 %v2465, %v47
  %v2482 = vmul.f32 %v2466, %v48
  %v2483 = vmul.f32 %v2467, %v49
  %v2484 = vmul.f32 %v2468, %v50
  %v2485 = vmul.f32 %v2469, %v51
  %v2486 = vmul.f32 %v2470, %v52
  %v2487 = vmul.f32 %v2471, %v53
  %v2488 = vmul.f32 %v2472, %v54
  %v2489 = vmul.f32 %v2473, %v55
  %v2490 = vmul.f32 %v2474, %v56
  %v2491 = vmul.f32 %v2475, %v57
  %2492 = vst [vmem:[%s12] sm:$0xff] %v2476
  %2493 = vst [vmem:[%s12 + $0x8] sm:$0xff] %v2477
  %2494 = vst [vmem:[%s12 + $0x10] sm:$0xff] %v2478
  %2495 = vst [vmem:[%s12 + $0x18] sm:$0xff] %v2479
  %2496 = vst [vmem:[%s12 + $0x20] sm:$0xff] %v2480
  %2497 = vst [vmem:[%s12 + $0x28] sm:$0xff] %v2481
  %2498 = vst [vmem:[%s12 + $0x30] sm:$0xff] %v2482
  %2499 = vst [vmem:[%s12 + $0x38] sm:$0xff] %v2483
  %2500 = vst [vmem:[%s12 + $0x40] sm:$0xff] %v2484
  %2501 = vst [vmem:[%s12 + $0x48] sm:$0xff] %v2485
  %2502 = vst [vmem:[%s12 + $0x50] sm:$0xff] %v2486
  %2503 = vst [vmem:[%s12 + $0x58] sm:$0xff] %v2487
  %2504 = vst [vmem:[%s12 + $0x60] sm:$0xff] %v2488
  %2505 = vst [vmem:[%s12 + $0x68] sm:$0xff] %v2489
  %2506 = vst [vmem:[%s12 + $0x70] sm:$0xff] %v2490
  %2507 = vst [vmem:[%s12 + $0x78] sm:$0xff] %v2491
  // Predicated region
  $region50: #{efficient_hybrid_attention.1} parent=0 // pred_check
    _
  $region51: #{efficient_hybrid_attention.1} parent=0 // pred_check_branch
    %2509 = sbr.rel (0) target = $region53
  $region52: #{efficient_hybrid_attention.1} parent=0 // pred_region
    _
  $region53: #{efficient_hybrid_attention.1} parent=0 // pred_fallthru
    _
  // Predicated region
  $region54: #{efficient_hybrid_attention.1} parent=0 // pred_check
    _
  $region55: #{efficient_hybrid_attention.1} parent=0 // pred_check_branch
    %2511 = sbr.rel (0) target = $region57
  $region56: #{efficient_hybrid_attention.1} parent=0 // pred_region
    _
  $region57: #{efficient_hybrid_attention.1} parent=0 // pred_fallthru
    _

</llo_original>
